<compile_context>
chip_gen: v5e
topology: v5e:2x2
jax: 0.10.0
libtpu: 0.0.40
codegen_flags: <defaults>
</compile_context>

<pallas_src>
import math

import numpy as np
import jax
import jax.numpy as jnp
from jax import lax
from jax.experimental import pallas as pl
from jax.experimental.pallas import tpu as pltpu

_BN_EPS = 1e-5


# ----------------------------------------------------------------------------
# Module configuration (replicates SparseConv2DForEZ._version0 layer shapes)
# ----------------------------------------------------------------------------
def _version0_config(in_planes, out_planes=2, kernel_size=3, n_conv=1, n_point=3,
                     conv_position=3, pointwise_factor=0.8, batchnorm=True):
    n_layers = n_conv + n_point
    if n_point > 0:
        increment = int(round(int(round(in_planes * pointwise_factor - out_planes))
                              / float(n_layers - 1)))
    else:
        increment = int(round(float(in_planes - out_planes) / float(n_layers)))
    if kernel_size % 2 != 1:
        raise ValueError('Kernel size must be an odd integer')
    out = in_planes
    inp = in_planes
    if n_conv > 0:
        conv_positions = list(range(conv_position - 1, conv_position - 1 + n_conv))
    else:
        conv_positions = []
    cfg = []
    for i in range(n_layers):
        if i == n_layers - 1:
            out = out_planes
        else:
            out -= increment
            if i == 0 and n_point > 0 and pointwise_factor > 0:
                out = int(round(pointwise_factor * in_planes))
        if i not in conv_positions:
            curr_kernel = 1
        else:
            curr_kernel = kernel_size - int((i + 1 - conv_position) * 2)
            if curr_kernel < 3:
                curr_kernel = 3
        pd = (curr_kernel - 1) // 2
        cfg.append(dict(cin=inp, cout=out, k=curr_kernel, pad=pd,
                        bn=(batchnorm and i != n_layers - 1)))
        inp = out
    return cfg


# ----------------------------------------------------------------------------
# Synthetic "module" parameters (conv weight HWIO, bias, BatchNorm1d params)
# ----------------------------------------------------------------------------
def _init_params(cfg, key):
    params = []
    for c in cfg:
        key, kw, kb, kg, kbe, km, kv = jax.random.split(key, 7)
        fan_in = c['cin'] * c['k'] * c['k']
        w = jax.random.normal(kw, (c['k'], c['k'], c['cin'], c['cout']),
                              jnp.float32) / math.sqrt(fan_in)
        b = jax.random.normal(kb, (c['cout'],), jnp.float32) * 0.1
        layer = dict(w=w, b=b)
        if c['bn']:
            layer['gamma'] = 1.0 + 0.1 * jax.random.normal(kg, (c['cout'],), jnp.float32)
            layer['beta'] = 0.1 * jax.random.normal(kbe, (c['cout'],), jnp.float32)
            layer['mean'] = 0.1 * jax.random.normal(km, (c['cout'],), jnp.float32)
            layer['var'] = jnp.abs(1.0 + 0.1 * jax.random.normal(kv, (c['cout'],), jnp.float32))
        params.append(layer)
    return params


# ----------------------------------------------------------------------------
# Wrapper-side parameter prep: fold BN into weights, transpose to kernel layout
# ----------------------------------------------------------------------------
def _fold_params(cfg, params):
    """Per layer returns (wt, b):
         wt : (k*k, cout, cin)  -- transposed taps, inference-BN scale folded in
         b  : (cout, 1)         -- bias*scale + shift
    """
    folded = []
    for c, p in zip(cfg, params):
        w = p['w']                    # (k, k, cin, cout)
        b = p['b']                    # (cout,)
        if c['bn']:
            scale = p['gamma'] / jnp.sqrt(p['var'] + _BN_EPS)
            shift = p['beta'] - p['mean'] * scale
            w = w * scale             # broadcast over cout (last dim)
            b = b * scale + shift
        k = c['k']
        wt = jnp.transpose(w.reshape(k * k, c['cin'], c['cout']), (0, 2, 1))
        folded.append((wt.astype(jnp.float32),
                       b.reshape(c['cout'], 1).astype(jnp.float32)))
    return folded


def _build_tap_masks(k, p, H, W):
    """0/1 boundary masks for each NON-CENTRE (dy,dx) tap: (k*k-1, 1, H*W) f32."""
    yy, xx = np.meshgrid(np.arange(H), np.arange(W), indexing='ij')
    masks = []
    for dy in range(k):
        for dx in range(k):
            if dy == p and dx == p:
                continue                      # centre tap never goes out of bounds
            ys = yy + dy - p
            xs = xx + dx - p
            valid = (ys >= 0) & (ys < H) & (xs >= 0) & (xs < W)
            masks.append(valid.reshape(1, H * W).astype(np.float32))
    return jnp.asarray(np.stack(masks, axis=0))


# ----------------------------------------------------------------------------
# Pallas kernel
# ----------------------------------------------------------------------------
def _make_kernel(cfg, H, W, Bt, n_inputs):
    HW = H * W

    def kernel(*refs):
        o_ref = refs[n_inputs]

        for bt in range(Bt):                       # images per grid step (static)
            f = refs[0][bt].astype(jnp.float32)    # (cin0, H*W): C on sublanes, H*W on lanes
            idx = 1
            for c in cfg:
                w_ref = refs[idx]                  # (k*k, cout, cin)
                b_ref = refs[idx + 1]              # (cout, 1)
                idx += 2
                k, p = c['k'], c['pad']

                if k == 1:
                    # pointwise conv == single MXU matmul, N = H*W lane-dense
                    f = jnp.dot(w_ref[0], f,
                                preferred_element_type=jnp.float32) + b_ref[...]
                else:
                    m_ref = refs[idx]              # (k*k-1, 1, H*W) boundary masks
                    idx += 1
                    # centre tap (no roll, no mask) seeds the accumulator + bias
                    centre = p * k + p
                    acc = jnp.dot(w_ref[centre], f,
                                  preferred_element_type=jnp.float32) + b_ref[...]
                    mi = 0
                    for dy in range(k):
                        for dx in range(k):
                            if dy == p and dx == p:
                                continue
                            # tap (dy,dx): shift flattened spatial by (dy-p)*W+(dx-p)
                            shift = ((p - dy) * W + (p - dx)) % HW
                            src = pltpu.roll(f, shift, 1)      # XLU, overlaps MXU
                            prod = jnp.dot(w_ref[dy * k + dx], src,
                                           preferred_element_type=jnp.float32)
                            acc = acc + prod * m_ref[mi]       # zero OOB columns
                            mi += 1
                    f = acc

                # (folded BN already in weights/bias) + ReLU
                f = jnp.maximum(f, 0.0)

            o_ref[bt] = f.astype(o_ref.dtype)      # (cout, H*W), lane-dense store

    return kernel


# ----------------------------------------------------------------------------
# Forward wrapper
# ----------------------------------------------------------------------------
def sparse_conv2d_forez_forward(x_nchw, cfg, params, *, n_grid=None):
    """x_nchw: (B, Cin, H, W) float32 -> (B, Cout, H, W) float32."""
    B, C, H, W = x_nchw.shape
    assert C == cfg[0]['cin']
    HW = H * W

    # No transpose: NCHW -> (B, C, H*W) is a free reshape.
    x = x_nchw.reshape(B, C, HW).astype(jnp.float32)

    folded = _fold_params(cfg, params)

    # Grid split: keep 2 parallel steps when possible (both v7x TensorCores);
    # multiple images per step amortize per-grid-step overhead on v5e/v6e.
    if n_grid is None:
        n_grid = 2 if (B >= 2 and B % 2 == 0) else 1
    assert B % n_grid == 0
    Bt = B // n_grid

    flat_inputs = [x]
    in_specs = [pl.BlockSpec((Bt, C, HW), lambda g: (g, 0, 0))]

    def full_spec(arr):
        r = arr.ndim
        return pl.BlockSpec(arr.shape, lambda g, r=r: (0,) * r)

    for c, (wt, b) in zip(cfg, folded):
        flat_inputs.append(wt)
        in_specs.append(full_spec(wt))
        flat_inputs.append(b)
        in_specs.append(full_spec(b))
        if c['k'] > 1:
            m = _build_tap_masks(c['k'], c['pad'], H, W)
            flat_inputs.append(m)
            in_specs.append(full_spec(m))

    n_inputs = len(flat_inputs)
    cout = cfg[-1]['cout']

    out_flat = pl.pallas_call(
        _make_kernel(cfg, H, W, Bt, n_inputs),
        out_shape=jax.ShapeDtypeStruct((B, cout, HW), jnp.float32),
        grid_spec=pltpu.PrefetchScalarGridSpec(
            num_scalar_prefetch=0,
            grid=(n_grid,),
            in_specs=in_specs,
            out_specs=pl.BlockSpec((Bt, cout, HW), lambda g: (g, 0, 0))),
        compiler_params=pltpu.CompilerParams(
            dimension_semantics=("parallel",)),
    )(*flat_inputs)

    return out_flat.reshape(B, cout, H, W)   # free reshape back to NCHW


# ----------------------------------------------------------------------------
# Pure-JAX reference (dense equivalent of the spconv stack, unfolded BN)
# ----------------------------------------------------------------------------
def reference_forward(x_nchw, cfg, params):
    x = jnp.transpose(x_nchw, (0, 2, 3, 1)).astype(jnp.float32)  # NHWC
    for c, p in zip(cfg, params):
        pd = c['pad']
        y = lax.conv_general_dilated(
            x, p['w'], window_strides=(1, 1),
            padding=[(pd, pd), (pd, pd)],
            dimension_numbers=('NHWC', 'HWIO', 'NHWC'))
        y = y + p['b'].reshape(1, 1, 1, -1)
        if c['bn']:
            scale = p['gamma'] / jnp.sqrt(p['var'] + _BN_EPS)
            shift = p['beta'] - p['mean'] * scale
            y = y * scale.reshape(1, 1, 1, -1) + shift.reshape(1, 1, 1, -1)
        x = jnp.maximum(y, 0.0)
    return jnp.transpose(x, (0, 3, 1, 2))


if __name__ == "__main__":
    # Small deterministic example: in_planes=16, out_planes=2 (module defaults
    # otherwise), B=2, H=W=16.
    in_planes = 16
    B, H, W = 2, 16, 16

    cfg = _version0_config(in_planes)  # [16->13 k1, 13->9 k1, 9->5 k3, 5->2 k1]

    key = jax.random.PRNGKey(0)
    key, kparams, kx = jax.random.split(key, 3)
    params = _init_params(cfg, kparams)
    x = jax.random.normal(kx, (B, in_planes, H, W), jnp.float32)  # NCHW input

    fwd = jax.jit(lambda xx, pp: sparse_conv2d_forez_forward(xx, cfg, pp))
    out = jax.block_until_ready(fwd(x, params))

    ref = jax.block_until_ready(reference_forward(x, cfg, params))
    assert out.shape == (B, 2, H, W), out.shape
    err = float(jnp.max(jnp.abs(out - ref)))
    assert jnp.allclose(out, ref, rtol=1e-4, atol=1e-4), err

    print("KERNEL_OK")
</pallas_src>

<mosaic_0001>
module attributes {stable_mosaic.version = 11 : i64} {
  func.func @kernel(%arg0: i32, %arg1: memref<1x16x256xf32, #tpu.memory_space<vmem>>, %arg2: memref<1x13x16xf32, #tpu.memory_space<vmem>>, %arg3: memref<13x1xf32, #tpu.memory_space<vmem>>, %arg4: memref<1x9x13xf32, #tpu.memory_space<vmem>>, %arg5: memref<9x1xf32, #tpu.memory_space<vmem>>, %arg6: memref<9x5x9xf32, #tpu.memory_space<vmem>>, %arg7: memref<5x1xf32, #tpu.memory_space<vmem>>, %arg8: memref<8x1x256xf32, #tpu.memory_space<vmem>>, %arg9: memref<1x2x5xf32, #tpu.memory_space<vmem>>, %arg10: memref<2x1xf32, #tpu.memory_space<vmem>>, %arg11: memref<1x2x256xf32, #tpu.memory_space<vmem>>) attributes {dimension_semantics = [#tpu.dimension_semantics<parallel>], iteration_bounds = array<i64: 2>, scalar_prefetch = 0 : i64, scratch_operands = 0 : i64, tpu.core_type = #tpu.core_type<tc>, window_params = [{transform_indices = @transform_0, window_bounds = array<i64: 1, 16, 256>}, {pipeline_mode = #tpu.pipeline_mode<synchronous>, transform_indices = @transform_1, window_bounds = array<i64: 1, 13, 16>}, {pipeline_mode = #tpu.pipeline_mode<synchronous>, transform_indices = @transform_2, window_bounds = array<i64: 13, 1>}, {pipeline_mode = #tpu.pipeline_mode<synchronous>, transform_indices = @transform_3, window_bounds = array<i64: 1, 9, 13>}, {pipeline_mode = #tpu.pipeline_mode<synchronous>, transform_indices = @transform_4, window_bounds = array<i64: 9, 1>}, {pipeline_mode = #tpu.pipeline_mode<synchronous>, transform_indices = @transform_5, window_bounds = array<i64: 9, 5, 9>}, {pipeline_mode = #tpu.pipeline_mode<synchronous>, transform_indices = @transform_6, window_bounds = array<i64: 5, 1>}, {pipeline_mode = #tpu.pipeline_mode<synchronous>, transform_indices = @transform_7, window_bounds = array<i64: 8, 1, 256>}, {pipeline_mode = #tpu.pipeline_mode<synchronous>, transform_indices = @transform_8, window_bounds = array<i64: 1, 2, 5>}, {pipeline_mode = #tpu.pipeline_mode<synchronous>, transform_indices = @transform_9, window_bounds = array<i64: 2, 1>}, {transform_indices = @transform_10, window_bounds = array<i64: 1, 2, 256>}]} {
    %c0 = arith.constant 0 : index
    %c0_0 = arith.constant 0 : index
    %c0_1 = arith.constant 0 : index
    %0 = vector.load %arg1[%c0, %c0_0, %c0_1] : memref<1x16x256xf32, #tpu.memory_space<vmem>>, vector<1x16x256xf32>
    %1 = vector.shape_cast %0 : vector<1x16x256xf32> to vector<16x256xf32>
    %c0_2 = arith.constant 0 : index
    %c0_3 = arith.constant 0 : index
    %c0_4 = arith.constant 0 : index
    %2 = vector.load %arg2[%c0_2, %c0_3, %c0_4] : memref<1x13x16xf32, #tpu.memory_space<vmem>>, vector<1x13x16xf32>
    %3 = vector.shape_cast %2 : vector<1x13x16xf32> to vector<13x16xf32>
    %cst = arith.constant dense<0.000000e+00> : vector<13x256xf32>
    %4 = tpu.matmul %3, %1, %cst {dimension_numbers = #tpu.dot_dimension_numbers<[1], [0], [0], [1], [0, 0, 1, 1], [], []>} : vector<13x16xf32>, vector<16x256xf32>, vector<13x256xf32> -> vector<13x256xf32>
    %c0_5 = arith.constant 0 : index
    %c0_6 = arith.constant 0 : index
    %5 = vector.load %arg3[%c0_5, %c0_6] : memref<13x1xf32, #tpu.memory_space<vmem>>, vector<13x1xf32>
    %6 = vector.broadcast %5 : vector<13x1xf32> to vector<13x256xf32>
    %7 = arith.addf %4, %6 : vector<13x256xf32>
    %cst_7 = arith.constant 0.000000e+00 : f32
    %8 = vector.broadcast %cst_7 : f32 to vector<13x256xf32>
    %9 = arith.maximumf %7, %8 : vector<13x256xf32>
    %c0_8 = arith.constant 0 : index
    %c0_9 = arith.constant 0 : index
    %c0_10 = arith.constant 0 : index
    %10 = vector.load %arg4[%c0_8, %c0_9, %c0_10] : memref<1x9x13xf32, #tpu.memory_space<vmem>>, vector<1x9x13xf32>
    %11 = vector.shape_cast %10 : vector<1x9x13xf32> to vector<9x13xf32>
    %cst_11 = arith.constant dense<0.000000e+00> : vector<9x256xf32>
    %12 = tpu.matmul %11, %9, %cst_11 {dimension_numbers = #tpu.dot_dimension_numbers<[1], [0], [0], [1], [0, 0, 1, 1], [], []>} : vector<9x13xf32>, vector<13x256xf32>, vector<9x256xf32> -> vector<9x256xf32>
    %c0_12 = arith.constant 0 : index
    %c0_13 = arith.constant 0 : index
    %13 = vector.load %arg5[%c0_12, %c0_13] : memref<9x1xf32, #tpu.memory_space<vmem>>, vector<9x1xf32>
    %14 = vector.broadcast %13 : vector<9x1xf32> to vector<9x256xf32>
    %15 = arith.addf %12, %14 : vector<9x256xf32>
    %cst_14 = arith.constant 0.000000e+00 : f32
    %16 = vector.broadcast %cst_14 : f32 to vector<9x256xf32>
    %17 = arith.maximumf %15, %16 : vector<9x256xf32>
    %c4 = arith.constant 4 : index
    %c0_15 = arith.constant 0 : index
    %c0_16 = arith.constant 0 : index
    %18 = vector.load %arg6[%c4, %c0_15, %c0_16] : memref<9x5x9xf32, #tpu.memory_space<vmem>>, vector<1x5x9xf32>
    %19 = vector.shape_cast %18 : vector<1x5x9xf32> to vector<5x9xf32>
    %cst_17 = arith.constant dense<0.000000e+00> : vector<5x256xf32>
    %20 = tpu.matmul %19, %17, %cst_17 {dimension_numbers = #tpu.dot_dimension_numbers<[1], [0], [0], [1], [0, 0, 1, 1], [], []>} : vector<5x9xf32>, vector<9x256xf32>, vector<5x256xf32> -> vector<5x256xf32>
    %c0_18 = arith.constant 0 : index
    %c0_19 = arith.constant 0 : index
    %21 = vector.load %arg7[%c0_18, %c0_19] : memref<5x1xf32, #tpu.memory_space<vmem>>, vector<5x1xf32>
    %22 = vector.broadcast %21 : vector<5x1xf32> to vector<5x256xf32>
    %23 = arith.addf %20, %22 : vector<5x256xf32>
    %c17_i32 = arith.constant 17 : i32
    %24 = tpu.dynamic_rotate %17 by %c17_i32 dim 1 : vector<9x256xf32>, i32 -> vector<9x256xf32>
    %c0_20 = arith.constant 0 : index
    %c0_21 = arith.constant 0 : index
    %c0_22 = arith.constant 0 : index
    %25 = vector.load %arg6[%c0_20, %c0_21, %c0_22] : memref<9x5x9xf32, #tpu.memory_space<vmem>>, vector<1x5x9xf32>
    %26 = vector.shape_cast %25 : vector<1x5x9xf32> to vector<5x9xf32>
    %cst_23 = arith.constant dense<0.000000e+00> : vector<5x256xf32>
    %27 = tpu.matmul %26, %24, %cst_23 {dimension_numbers = #tpu.dot_dimension_numbers<[1], [0], [0], [1], [0, 0, 1, 1], [], []>} : vector<5x9xf32>, vector<9x256xf32>, vector<5x256xf32> -> vector<5x256xf32>
    %c0_24 = arith.constant 0 : index
    %c0_25 = arith.constant 0 : index
    %c0_26 = arith.constant 0 : index
    %28 = vector.load %arg8[%c0_24, %c0_25, %c0_26] : memref<8x1x256xf32, #tpu.memory_space<vmem>>, vector<1x1x256xf32>
    %29 = vector.shape_cast %28 : vector<1x1x256xf32> to vector<1x256xf32>
    %30 = vector.broadcast %29 : vector<1x256xf32> to vector<5x256xf32>
    %31 = arith.mulf %27, %30 : vector<5x256xf32>
    %32 = arith.addf %23, %31 : vector<5x256xf32>
    %c16_i32 = arith.constant 16 : i32
    %33 = tpu.dynamic_rotate %17 by %c16_i32 dim 1 : vector<9x256xf32>, i32 -> vector<9x256xf32>
    %c1 = arith.constant 1 : index
    %c0_27 = arith.constant 0 : index
    %c0_28 = arith.constant 0 : index
    %34 = vector.load %arg6[%c1, %c0_27, %c0_28] : memref<9x5x9xf32, #tpu.memory_space<vmem>>, vector<1x5x9xf32>
    %35 = vector.shape_cast %34 : vector<1x5x9xf32> to vector<5x9xf32>
    %cst_29 = arith.constant dense<0.000000e+00> : vector<5x256xf32>
    %36 = tpu.matmul %35, %33, %cst_29 {dimension_numbers = #tpu.dot_dimension_numbers<[1], [0], [0], [1], [0, 0, 1, 1], [], []>} : vector<5x9xf32>, vector<9x256xf32>, vector<5x256xf32> -> vector<5x256xf32>
    %c1_30 = arith.constant 1 : index
    %c0_31 = arith.constant 0 : index
    %c0_32 = arith.constant 0 : index
    %37 = vector.load %arg8[%c1_30, %c0_31, %c0_32] : memref<8x1x256xf32, #tpu.memory_space<vmem>>, vector<1x1x256xf32>
    %38 = vector.shape_cast %37 : vector<1x1x256xf32> to vector<1x256xf32>
    %39 = vector.broadcast %38 : vector<1x256xf32> to vector<5x256xf32>
    %40 = arith.mulf %36, %39 : vector<5x256xf32>
    %41 = arith.addf %32, %40 : vector<5x256xf32>
    %c15_i32 = arith.constant 15 : i32
    %42 = tpu.dynamic_rotate %17 by %c15_i32 dim 1 : vector<9x256xf32>, i32 -> vector<9x256xf32>
    %c2 = arith.constant 2 : index
    %c0_33 = arith.constant 0 : index
    %c0_34 = arith.constant 0 : index
    %43 = vector.load %arg6[%c2, %c0_33, %c0_34] : memref<9x5x9xf32, #tpu.memory_space<vmem>>, vector<1x5x9xf32>
    %44 = vector.shape_cast %43 : vector<1x5x9xf32> to vector<5x9xf32>
    %cst_35 = arith.constant dense<0.000000e+00> : vector<5x256xf32>
    %45 = tpu.matmul %44, %42, %cst_35 {dimension_numbers = #tpu.dot_dimension_numbers<[1], [0], [0], [1], [0, 0, 1, 1], [], []>} : vector<5x9xf32>, vector<9x256xf32>, vector<5x256xf32> -> vector<5x256xf32>
    %c2_36 = arith.constant 2 : index
    %c0_37 = arith.constant 0 : index
    %c0_38 = arith.constant 0 : index
    %46 = vector.load %arg8[%c2_36, %c0_37, %c0_38] : memref<8x1x256xf32, #tpu.memory_space<vmem>>, vector<1x1x256xf32>
    %47 = vector.shape_cast %46 : vector<1x1x256xf32> to vector<1x256xf32>
    %48 = vector.broadcast %47 : vector<1x256xf32> to vector<5x256xf32>
    %49 = arith.mulf %45, %48 : vector<5x256xf32>
    %50 = arith.addf %41, %49 : vector<5x256xf32>
    %c1_i32 = arith.constant 1 : i32
    %51 = tpu.dynamic_rotate %17 by %c1_i32 dim 1 : vector<9x256xf32>, i32 -> vector<9x256xf32>
    %c3 = arith.constant 3 : index
    %c0_39 = arith.constant 0 : index
    %c0_40 = arith.constant 0 : index
    %52 = vector.load %arg6[%c3, %c0_39, %c0_40] : memref<9x5x9xf32, #tpu.memory_space<vmem>>, vector<1x5x9xf32>
    %53 = vector.shape_cast %52 : vector<1x5x9xf32> to vector<5x9xf32>
    %cst_41 = arith.constant dense<0.000000e+00> : vector<5x256xf32>
    %54 = tpu.matmul %53, %51, %cst_41 {dimension_numbers = #tpu.dot_dimension_numbers<[1], [0], [0], [1], [0, 0, 1, 1], [], []>} : vector<5x9xf32>, vector<9x256xf32>, vector<5x256xf32> -> vector<5x256xf32>
    %c3_42 = arith.constant 3 : index
    %c0_43 = arith.constant 0 : index
    %c0_44 = arith.constant 0 : index
    %55 = vector.load %arg8[%c3_42, %c0_43, %c0_44] : memref<8x1x256xf32, #tpu.memory_space<vmem>>, vector<1x1x256xf32>
    %56 = vector.shape_cast %55 : vector<1x1x256xf32> to vector<1x256xf32>
    %57 = vector.broadcast %56 : vector<1x256xf32> to vector<5x256xf32>
    %58 = arith.mulf %54, %57 : vector<5x256xf32>
    %59 = arith.addf %50, %58 : vector<5x256xf32>
    %c255_i32 = arith.constant 255 : i32
    %60 = tpu.dynamic_rotate %17 by %c255_i32 dim 1 : vector<9x256xf32>, i32 -> vector<9x256xf32>
    %c5 = arith.constant 5 : index
    %c0_45 = arith.constant 0 : index
    %c0_46 = arith.constant 0 : index
    %61 = vector.load %arg6[%c5, %c0_45, %c0_46] : memref<9x5x9xf32, #tpu.memory_space<vmem>>, vector<1x5x9xf32>
    %62 = vector.shape_cast %61 : vector<1x5x9xf32> to vector<5x9xf32>
    %cst_47 = arith.constant dense<0.000000e+00> : vector<5x256xf32>
    %63 = tpu.matmul %62, %60, %cst_47 {dimension_numbers = #tpu.dot_dimension_numbers<[1], [0], [0], [1], [0, 0, 1, 1], [], []>} : vector<5x9xf32>, vector<9x256xf32>, vector<5x256xf32> -> vector<5x256xf32>
    %c4_48 = arith.constant 4 : index
    %c0_49 = arith.constant 0 : index
    %c0_50 = arith.constant 0 : index
    %64 = vector.load %arg8[%c4_48, %c0_49, %c0_50] : memref<8x1x256xf32, #tpu.memory_space<vmem>>, vector<1x1x256xf32>
    %65 = vector.shape_cast %64 : vector<1x1x256xf32> to vector<1x256xf32>
    %66 = vector.broadcast %65 : vector<1x256xf32> to vector<5x256xf32>
    %67 = arith.mulf %63, %66 : vector<5x256xf32>
    %68 = arith.addf %59, %67 : vector<5x256xf32>
    %c241_i32 = arith.constant 241 : i32
    %69 = tpu.dynamic_rotate %17 by %c241_i32 dim 1 : vector<9x256xf32>, i32 -> vector<9x256xf32>
    %c6 = arith.constant 6 : index
    %c0_51 = arith.constant 0 : index
    %c0_52 = arith.constant 0 : index
    %70 = vector.load %arg6[%c6, %c0_51, %c0_52] : memref<9x5x9xf32, #tpu.memory_space<vmem>>, vector<1x5x9xf32>
    %71 = vector.shape_cast %70 : vector<1x5x9xf32> to vector<5x9xf32>
    %cst_53 = arith.constant dense<0.000000e+00> : vector<5x256xf32>
    %72 = tpu.matmul %71, %69, %cst_53 {dimension_numbers = #tpu.dot_dimension_numbers<[1], [0], [0], [1], [0, 0, 1, 1], [], []>} : vector<5x9xf32>, vector<9x256xf32>, vector<5x256xf32> -> vector<5x256xf32>
    %c5_54 = arith.constant 5 : index
    %c0_55 = arith.constant 0 : index
    %c0_56 = arith.constant 0 : index
    %73 = vector.load %arg8[%c5_54, %c0_55, %c0_56] : memref<8x1x256xf32, #tpu.memory_space<vmem>>, vector<1x1x256xf32>
    %74 = vector.shape_cast %73 : vector<1x1x256xf32> to vector<1x256xf32>
    %75 = vector.broadcast %74 : vector<1x256xf32> to vector<5x256xf32>
    %76 = arith.mulf %72, %75 : vector<5x256xf32>
    %77 = arith.addf %68, %76 : vector<5x256xf32>
    %c240_i32 = arith.constant 240 : i32
    %78 = tpu.dynamic_rotate %17 by %c240_i32 dim 1 : vector<9x256xf32>, i32 -> vector<9x256xf32>
    %c7 = arith.constant 7 : index
    %c0_57 = arith.constant 0 : index
    %c0_58 = arith.constant 0 : index
    %79 = vector.load %arg6[%c7, %c0_57, %c0_58] : memref<9x5x9xf32, #tpu.memory_space<vmem>>, vector<1x5x9xf32>
    %80 = vector.shape_cast %79 : vector<1x5x9xf32> to vector<5x9xf32>
    %cst_59 = arith.constant dense<0.000000e+00> : vector<5x256xf32>
    %81 = tpu.matmul %80, %78, %cst_59 {dimension_numbers = #tpu.dot_dimension_numbers<[1], [0], [0], [1], [0, 0, 1, 1], [], []>} : vector<5x9xf32>, vector<9x256xf32>, vector<5x256xf32> -> vector<5x256xf32>
    %c6_60 = arith.constant 6 : index
    %c0_61 = arith.constant 0 : index
    %c0_62 = arith.constant 0 : index
    %82 = vector.load %arg8[%c6_60, %c0_61, %c0_62] : memref<8x1x256xf32, #tpu.memory_space<vmem>>, vector<1x1x256xf32>
    %83 = vector.shape_cast %82 : vector<1x1x256xf32> to vector<1x256xf32>
    %84 = vector.broadcast %83 : vector<1x256xf32> to vector<5x256xf32>
    %85 = arith.mulf %81, %84 : vector<5x256xf32>
    %86 = arith.addf %77, %85 : vector<5x256xf32>
    %c239_i32 = arith.constant 239 : i32
    %87 = tpu.dynamic_rotate %17 by %c239_i32 dim 1 : vector<9x256xf32>, i32 -> vector<9x256xf32>
    %c8 = arith.constant 8 : index
    %c0_63 = arith.constant 0 : index
    %c0_64 = arith.constant 0 : index
    %88 = vector.load %arg6[%c8, %c0_63, %c0_64] : memref<9x5x9xf32, #tpu.memory_space<vmem>>, vector<1x5x9xf32>
    %89 = vector.shape_cast %88 : vector<1x5x9xf32> to vector<5x9xf32>
    %cst_65 = arith.constant dense<0.000000e+00> : vector<5x256xf32>
    %90 = tpu.matmul %89, %87, %cst_65 {dimension_numbers = #tpu.dot_dimension_numbers<[1], [0], [0], [1], [0, 0, 1, 1], [], []>} : vector<5x9xf32>, vector<9x256xf32>, vector<5x256xf32> -> vector<5x256xf32>
    %c7_66 = arith.constant 7 : index
    %c0_67 = arith.constant 0 : index
    %c0_68 = arith.constant 0 : index
    %91 = vector.load %arg8[%c7_66, %c0_67, %c0_68] : memref<8x1x256xf32, #tpu.memory_space<vmem>>, vector<1x1x256xf32>
    %92 = vector.shape_cast %91 : vector<1x1x256xf32> to vector<1x256xf32>
    %93 = vector.broadcast %92 : vector<1x256xf32> to vector<5x256xf32>
    %94 = arith.mulf %90, %93 : vector<5x256xf32>
    %95 = arith.addf %86, %94 : vector<5x256xf32>
    %cst_69 = arith.constant 0.000000e+00 : f32
    %96 = vector.broadcast %cst_69 : f32 to vector<5x256xf32>
    %97 = arith.maximumf %95, %96 : vector<5x256xf32>
    %c0_70 = arith.constant 0 : index
    %c0_71 = arith.constant 0 : index
    %c0_72 = arith.constant 0 : index
    %98 = vector.load %arg9[%c0_70, %c0_71, %c0_72] : memref<1x2x5xf32, #tpu.memory_space<vmem>>, vector<1x2x5xf32>
    %99 = vector.shape_cast %98 : vector<1x2x5xf32> to vector<2x5xf32>
    %cst_73 = arith.constant dense<0.000000e+00> : vector<2x256xf32>
    %100 = tpu.matmul %99, %97, %cst_73 {dimension_numbers = #tpu.dot_dimension_numbers<[1], [0], [0], [1], [0, 0, 1, 1], [], []>} : vector<2x5xf32>, vector<5x256xf32>, vector<2x256xf32> -> vector<2x256xf32>
    %c0_74 = arith.constant 0 : index
    %c0_75 = arith.constant 0 : index
    %101 = vector.load %arg10[%c0_74, %c0_75] : memref<2x1xf32, #tpu.memory_space<vmem>>, vector<2x1xf32>
    %102 = vector.broadcast %101 : vector<2x1xf32> to vector<2x256xf32>
    %103 = arith.addf %100, %102 : vector<2x256xf32>
    %cst_76 = arith.constant 0.000000e+00 : f32
    %104 = vector.broadcast %cst_76 : f32 to vector<2x256xf32>
    %105 = arith.maximumf %103, %104 : vector<2x256xf32>
    %c0_77 = arith.constant 0 : index
    %c0_78 = arith.constant 0 : index
    %c0_79 = arith.constant 0 : index
    %106 = vector.load %arg11[%c0_77, %c0_78, %c0_79] : memref<1x2x256xf32, #tpu.memory_space<vmem>>, vector<1x2x256xf32>
    %107 = vector.shape_cast %106 : vector<1x2x256xf32> to vector<2x256xf32>
    %108 = vector.shape_cast %105 : vector<2x256xf32> to vector<1x2x256xf32>
    tpu.vector_store %arg11[%c0_77, %c0_78, %c0_79], %108 {strides = array<i32>} : memref<1x2x256xf32, #tpu.memory_space<vmem>>, vector<1x2x256xf32>,
    return
  }
  func.func @transform_0(%arg0: i32) -> (i32, i32, i32) {
    %c0_i32 = arith.constant 0 : i32
    %c0_i32_0 = arith.constant 0 : i32
    %c0_i32_1 = arith.constant 0 : i32
    return %arg0, %c0_i32, %c0_i32_0 : i32, i32, i32
  }
  func.func @transform_1(%arg0: i32) -> (i32, i32, i32) {
    %c0_i32 = arith.constant 0 : i32
    %c0_i32_0 = arith.constant 0 : i32
    %c0_i32_1 = arith.constant 0 : i32
    %c0_i32_2 = arith.constant 0 : i32
    return %c0_i32, %c0_i32_0, %c0_i32_1 : i32, i32, i32
  }
  func.func @transform_2(%arg0: i32) -> (i32, i32) {
    %c0_i32 = arith.constant 0 : i32
    %c0_i32_0 = arith.constant 0 : i32
    %c0_i32_1 = arith.constant 0 : i32
    return %c0_i32, %c0_i32_0 : i32, i32
  }
  func.func @transform_3(%arg0: i32) -> (i32, i32, i32) {
    %c0_i32 = arith.constant 0 : i32
    %c0_i32_0 = arith.constant 0 : i32
    %c0_i32_1 = arith.constant 0 : i32
    %c0_i32_2 = arith.constant 0 : i32
    return %c0_i32, %c0_i32_0, %c0_i32_1 : i32, i32, i32
  }
  func.func @transform_4(%arg0: i32) -> (i32, i32) {
    %c0_i32 = arith.constant 0 : i32
    %c0_i32_0 = arith.constant 0 : i32
    %c0_i32_1 = arith.constant 0 : i32
    return %c0_i32, %c0_i32_0 : i32, i32
  }
  func.func @transform_5(%arg0: i32) -> (i32, i32, i32) {
    %c0_i32 = arith.constant 0 : i32
    %c0_i32_0 = arith.constant 0 : i32
    %c0_i32_1 = arith.constant 0 : i32
    %c0_i32_2 = arith.constant 0 : i32
    return %c0_i32, %c0_i32_0, %c0_i32_1 : i32, i32, i32
  }
  func.func @transform_6(%arg0: i32) -> (i32, i32) {
    %c0_i32 = arith.constant 0 : i32
    %c0_i32_0 = arith.constant 0 : i32
    %c0_i32_1 = arith.constant 0 : i32
    return %c0_i32, %c0_i32_0 : i32, i32
  }
  func.func @transform_7(%arg0: i32) -> (i32, i32, i32) {
    %c0_i32 = arith.constant 0 : i32
    %c0_i32_0 = arith.constant 0 : i32
    %c0_i32_1 = arith.constant 0 : i32
    %c0_i32_2 = arith.constant 0 : i32
    return %c0_i32, %c0_i32_0, %c0_i32_1 : i32, i32, i32
  }
  func.func @transform_8(%arg0: i32) -> (i32, i32, i32) {
    %c0_i32 = arith.constant 0 : i32
    %c0_i32_0 = arith.constant 0 : i32
    %c0_i32_1 = arith.constant 0 : i32
    %c0_i32_2 = arith.constant 0 : i32
    return %c0_i32, %c0_i32_0, %c0_i32_1 : i32, i32, i32
  }
  func.func @transform_9(%arg0: i32) -> (i32, i32) {
    %c0_i32 = arith.constant 0 : i32
    %c0_i32_0 = arith.constant 0 : i32
    %c0_i32_1 = arith.constant 0 : i32
    return %c0_i32, %c0_i32_0 : i32, i32
  }
  func.func @transform_10(%arg0: i32) -> (i32, i32, i32) {
    %c0_i32 = arith.constant 0 : i32
    %c0_i32_0 = arith.constant 0 : i32
    %c0_i32_1 = arith.constant 0 : i32
    return %arg0, %c0_i32, %c0_i32_0 : i32, i32, i32
  }
}

</mosaic_0001>

<llo_original>
// kernel: _lambda_.1
$region0: #{_lambda_.1}
  #allocation0 [shape = 'u32[]', space=smem, size = 0x4, offset = 0x4, fixed_abs, tag = 'smem constant byte address 0x4 - core index']
  #allocation1 [shape = 'u32[72,128]{1,0:T(1,128)}', space=vmem, size = 0x9000, scoped, tag = 'internal scratch']
  %s0 = inlined_call_operand.vmem [shape: f32[2,16,256], index: 0, kind: input, shape index: {}]
  %s1 = inlined_call_operand.vmem [shape: f32[1,13,16], index: 1, kind: input, shape index: {}]
  %s2 = inlined_call_operand.vmem [shape: f32[13,1], index: 2, kind: input, shape index: {}]
  %s3 = inlined_call_operand.vmem [shape: f32[1,9,13], index: 3, kind: input, shape index: {}]
  %s4 = inlined_call_operand.vmem [shape: f32[9,1], index: 4, kind: input, shape index: {}]
  %s5 = inlined_call_operand.vmem [shape: f32[9,5,9], index: 5, kind: input, shape index: {}]
  %s6 = inlined_call_operand.vmem [shape: f32[5,1], index: 6, kind: input, shape index: {}]
  %s7 = inlined_call_operand.vmem [shape: f32[8,1,256], index: 7, kind: input, shape index: {}]
  %s8 = inlined_call_operand.vmem [shape: f32[1,2,5], index: 8, kind: input, shape index: {}]
  %s9 = inlined_call_operand.vmem [shape: f32[2,1], index: 9, kind: input, shape index: {}]
  %s10 = inlined_call_operand.vmem [shape: f32[2,2,256], index: 10, kind: output, shape index: {}]
  %s11 = sld [smem:[#allocation0]]
  $region73: #{_lambda_.1} parent=0
    _
  %s13 = ssub.s32 1, %s11
  %s14 = scalar_select 0, %s13, %s11
  loop: start=0, step=1, limit=4
  $region2: #{_lambda_.1} parent=0 // loop_pre_header
    _
  $region3: #{_lambda_.1} parent=0 // loop_header
    %s16 = sphi 0, %s20
    %p17 = scmp.ge.s32.totalorder %s16, 4
    %s26 = sphi 0, %s28
    %s29 = sphi 0, %s26
    %s30 = sphi 0, %s29
    %s46 = sphi 0, %s30
    %s50 = sphi 0, %s50
    %s52 = sphi 0, %s50
    %s53 = sphi 0, %s52
    %s67 = sphi 0, %s53
    %s71 = sphi 0, %s71
    %s73 = sphi 0, %s71
    %s74 = sphi 0, %s73
    %s88 = sphi 0, %s74
    %s92 = sphi 0, %s92
    %s94 = sphi 0, %s92
    %s95 = sphi 0, %s94
    %s109 = sphi 0, %s95
    %s113 = sphi 0, %s113
    %s115 = sphi 0, %s113
    %s116 = sphi 0, %s115
    %s130 = sphi 0, %s116
    %s134 = sphi 0, %s134
    %s136 = sphi 0, %s134
    %s137 = sphi 0, %s136
    %s151 = sphi 0, %s137
    %s155 = sphi 0, %s155
    %s157 = sphi 0, %s155
    %s158 = sphi 0, %s157
    %s172 = sphi 0, %s158
    %s176 = sphi 0, %s176
    %s178 = sphi 0, %s176
    %s179 = sphi 0, %s178
    %s193 = sphi 0, %s179
    %s197 = sphi 0, %s197
    %s199 = sphi 0, %s197
    %s200 = sphi 0, %s199
    %s214 = sphi 0, %s200
    %s218 = sphi 0, %s218
    %s220 = sphi 0, %s218
    %s221 = sphi 0, %s220
    %s235 = sphi 0, %s221
    %s241 = sphi 0, %s243
    %s244 = sphi 0, %s241
    %s245 = sphi 0, %s244
    %s261 = sphi 0, %s245
  $region4: #{_lambda_.1} parent=0 // loop_header_branch
    %19 = sbr.rel (%p17) target = $region8
  $region5: #{_lambda_.1} parent=0 // loop_body
    %s21 = ssub.s32 %s16, 1
    %s22 = ssub.s32 %s16, 2
    %s23 = sadd.s32 %s16, 1
    %s24 = ssub.s32 %s16, %s23
    %p25 = scmp.eq.s32.totalorder %s24, 0
    %s27 = sadd.s32 %s26, 1
    %s28 = scalar_select %p25, %s26, %s27
    %p31 = pneg %p25
    %p32 = scmp.eq.s32.totalorder %s16, 1
    %p33 = por %p31, %p32
    %p34 = scmp.ne.s32.totalorder %s26, %s29
    %p35 = scmp.eq.s32.totalorder %s16, 0
    %p36 = por %p34, %p35
    %p37 = scmp.ne.s32.totalorder %s26, %s29
    %p38 = scmp.eq.s32.totalorder %s21, 1
    %p39 = por %p37, %p38
    %p40 = scmp.ne.s32.totalorder %s29, %s30
    %p41 = scmp.eq.s32.totalorder %s21, 0
    %p42 = por %p40, %p41
    %p43 = scmp.ne.s32.totalorder %s29, %s30
    %p44 = scmp.eq.s32.totalorder %s22, 1
    %p45 = por %p43, %p44
    %p47 = scmp.ne.s32.totalorder %s30, %s46
    %p48 = scmp.eq.s32.totalorder %s22, 0
    %p49 = por %p47, %p48
    %s51 = sadd.s32 %s50, 1
    %p54 = scmp.eq.s32.totalorder %s16, 1
    %p55 = scmp.ne.s32.totalorder %s50, %s52
    %p56 = scmp.eq.s32.totalorder %s16, 0
    %p57 = por %p55, %p56
    %p58 = scmp.ne.s32.totalorder %s50, %s52
    %p59 = scmp.eq.s32.totalorder %s21, 1
    %p60 = por %p58, %p59
    %p61 = scmp.ne.s32.totalorder %s52, %s53
    %p62 = scmp.eq.s32.totalorder %s21, 0
    %p63 = por %p61, %p62
    %p64 = scmp.ne.s32.totalorder %s52, %s53
    %p65 = scmp.eq.s32.totalorder %s22, 1
    %p66 = por %p64, %p65
    %p68 = scmp.ne.s32.totalorder %s53, %s67
    %p69 = scmp.eq.s32.totalorder %s22, 0
    %p70 = por %p68, %p69
    %s72 = sadd.s32 %s71, 1
    %p75 = scmp.eq.s32.totalorder %s16, 1
    %p76 = scmp.ne.s32.totalorder %s71, %s73
    %p77 = scmp.eq.s32.totalorder %s16, 0
    %p78 = por %p76, %p77
    %p79 = scmp.ne.s32.totalorder %s71, %s73
    %p80 = scmp.eq.s32.totalorder %s21, 1
    %p81 = por %p79, %p80
    %p82 = scmp.ne.s32.totalorder %s73, %s74
    %p83 = scmp.eq.s32.totalorder %s21, 0
    %p84 = por %p82, %p83
    %p85 = scmp.ne.s32.totalorder %s73, %s74
    %p86 = scmp.eq.s32.totalorder %s22, 1
    %p87 = por %p85, %p86
    %p89 = scmp.ne.s32.totalorder %s74, %s88
    %p90 = scmp.eq.s32.totalorder %s22, 0
    %p91 = por %p89, %p90
    %s93 = sadd.s32 %s92, 1
    %p96 = scmp.eq.s32.totalorder %s16, 1
    %p97 = scmp.ne.s32.totalorder %s92, %s94
    %p98 = scmp.eq.s32.totalorder %s16, 0
    %p99 = por %p97, %p98
    %p100 = scmp.ne.s32.totalorder %s92, %s94
    %p101 = scmp.eq.s32.totalorder %s21, 1
    %p102 = por %p100, %p101
    %p103 = scmp.ne.s32.totalorder %s94, %s95
    %p104 = scmp.eq.s32.totalorder %s21, 0
    %p105 = por %p103, %p104
    %p106 = scmp.ne.s32.totalorder %s94, %s95
    %p107 = scmp.eq.s32.totalorder %s22, 1
    %p108 = por %p106, %p107
    %p110 = scmp.ne.s32.totalorder %s95, %s109
    %p111 = scmp.eq.s32.totalorder %s22, 0
    %p112 = por %p110, %p111
    %s114 = sadd.s32 %s113, 1
    %p117 = scmp.eq.s32.totalorder %s16, 1
    %p118 = scmp.ne.s32.totalorder %s113, %s115
    %p119 = scmp.eq.s32.totalorder %s16, 0
    %p120 = por %p118, %p119
    %p121 = scmp.ne.s32.totalorder %s113, %s115
    %p122 = scmp.eq.s32.totalorder %s21, 1
    %p123 = por %p121, %p122
    %p124 = scmp.ne.s32.totalorder %s115, %s116
    %p125 = scmp.eq.s32.totalorder %s21, 0
    %p126 = por %p124, %p125
    %p127 = scmp.ne.s32.totalorder %s115, %s116
    %p128 = scmp.eq.s32.totalorder %s22, 1
    %p129 = por %p127, %p128
    %p131 = scmp.ne.s32.totalorder %s116, %s130
    %p132 = scmp.eq.s32.totalorder %s22, 0
    %p133 = por %p131, %p132
    %s135 = sadd.s32 %s134, 1
    %p138 = scmp.eq.s32.totalorder %s16, 1
    %p139 = scmp.ne.s32.totalorder %s134, %s136
    %p140 = scmp.eq.s32.totalorder %s16, 0
    %p141 = por %p139, %p140
    %p142 = scmp.ne.s32.totalorder %s134, %s136
    %p143 = scmp.eq.s32.totalorder %s21, 1
    %p144 = por %p142, %p143
    %p145 = scmp.ne.s32.totalorder %s136, %s137
    %p146 = scmp.eq.s32.totalorder %s21, 0
    %p147 = por %p145, %p146
    %p148 = scmp.ne.s32.totalorder %s136, %s137
    %p149 = scmp.eq.s32.totalorder %s22, 1
    %p150 = por %p148, %p149
    %p152 = scmp.ne.s32.totalorder %s137, %s151
    %p153 = scmp.eq.s32.totalorder %s22, 0
    %p154 = por %p152, %p153
    %s156 = sadd.s32 %s155, 1
    %p159 = scmp.eq.s32.totalorder %s16, 1
    %p160 = scmp.ne.s32.totalorder %s155, %s157
    %p161 = scmp.eq.s32.totalorder %s16, 0
    %p162 = por %p160, %p161
    %p163 = scmp.ne.s32.totalorder %s155, %s157
    %p164 = scmp.eq.s32.totalorder %s21, 1
    %p165 = por %p163, %p164
    %p166 = scmp.ne.s32.totalorder %s157, %s158
    %p167 = scmp.eq.s32.totalorder %s21, 0
    %p168 = por %p166, %p167
    %p169 = scmp.ne.s32.totalorder %s157, %s158
    %p170 = scmp.eq.s32.totalorder %s22, 1
    %p171 = por %p169, %p170
    %p173 = scmp.ne.s32.totalorder %s158, %s172
    %p174 = scmp.eq.s32.totalorder %s22, 0
    %p175 = por %p173, %p174
    %s177 = sadd.s32 %s176, 1
    %p180 = scmp.eq.s32.totalorder %s16, 1
    %p181 = scmp.ne.s32.totalorder %s176, %s178
    %p182 = scmp.eq.s32.totalorder %s16, 0
    %p183 = por %p181, %p182
    %p184 = scmp.ne.s32.totalorder %s176, %s178
    %p185 = scmp.eq.s32.totalorder %s21, 1
    %p186 = por %p184, %p185
    %p187 = scmp.ne.s32.totalorder %s178, %s179
    %p188 = scmp.eq.s32.totalorder %s21, 0
    %p189 = por %p187, %p188
    %p190 = scmp.ne.s32.totalorder %s178, %s179
    %p191 = scmp.eq.s32.totalorder %s22, 1
    %p192 = por %p190, %p191
    %p194 = scmp.ne.s32.totalorder %s179, %s193
    %p195 = scmp.eq.s32.totalorder %s22, 0
    %p196 = por %p194, %p195
    %s198 = sadd.s32 %s197, 1
    %p201 = scmp.eq.s32.totalorder %s16, 1
    %p202 = scmp.ne.s32.totalorder %s197, %s199
    %p203 = scmp.eq.s32.totalorder %s16, 0
    %p204 = por %p202, %p203
    %p205 = scmp.ne.s32.totalorder %s197, %s199
    %p206 = scmp.eq.s32.totalorder %s21, 1
    %p207 = por %p205, %p206
    %p208 = scmp.ne.s32.totalorder %s199, %s200
    %p209 = scmp.eq.s32.totalorder %s21, 0
    %p210 = por %p208, %p209
    %p211 = scmp.ne.s32.totalorder %s199, %s200
    %p212 = scmp.eq.s32.totalorder %s22, 1
    %p213 = por %p211, %p212
    %p215 = scmp.ne.s32.totalorder %s200, %s214
    %p216 = scmp.eq.s32.totalorder %s22, 0
    %p217 = por %p215, %p216
    %s219 = sadd.s32 %s218, 1
    %p222 = scmp.eq.s32.totalorder %s16, 1
    %p223 = scmp.ne.s32.totalorder %s218, %s220
    %p224 = scmp.eq.s32.totalorder %s16, 0
    %p225 = por %p223, %p224
    %p226 = scmp.ne.s32.totalorder %s218, %s220
    %p227 = scmp.eq.s32.totalorder %s21, 1
    %p228 = por %p226, %p227
    %p229 = scmp.ne.s32.totalorder %s220, %s221
    %p230 = scmp.eq.s32.totalorder %s21, 0
    %p231 = por %p229, %p230
    %p232 = scmp.ne.s32.totalorder %s220, %s221
    %p233 = scmp.eq.s32.totalorder %s22, 1
    %p234 = por %p232, %p233
    %p236 = scmp.ne.s32.totalorder %s221, %s235
    %p237 = scmp.eq.s32.totalorder %s22, 0
    %p238 = por %p236, %p237
    %s239 = ssub.s32 %s16, %s23
    %p240 = scmp.eq.s32.totalorder %s239, 0
    %s242 = sadd.s32 %s241, 1
    %s243 = scalar_select %p240, %s241, %s242
    %p246 = pneg %p240
    %p247 = scmp.eq.s32.totalorder %s16, 1
    %p248 = por %p246, %p247
    %p249 = scmp.ne.s32.totalorder %s241, %s244
    %p250 = scmp.eq.s32.totalorder %s16, 0
    %p251 = por %p249, %p250
    %p252 = scmp.ne.s32.totalorder %s241, %s244
    %p253 = scmp.eq.s32.totalorder %s21, 1
    %p254 = por %p252, %p253
    %p255 = scmp.ne.s32.totalorder %s244, %s245
    %p256 = scmp.eq.s32.totalorder %s21, 0
    %p257 = por %p255, %p256
    %p258 = scmp.ne.s32.totalorder %s244, %s245
    %p259 = scmp.eq.s32.totalorder %s22, 1
    %p260 = por %p258, %p259
    %p262 = scmp.ne.s32.totalorder %s245, %s261
    %p263 = scmp.eq.s32.totalorder %s22, 0
    %p264 = por %p262, %p263
    %p265 = scmp.le.s32.totalorder 1, %s16
    %p266 = scmp.lt.s32.totalorder %s16, 3
    %p267 = pnand %p265, %p266
    %p268 = pneg %p267
    // Predicated region
    $region9: #{_lambda_.1} parent=5 // pred_check
      _
    $region10: #{_lambda_.1} parent=5 // pred_check_branch
      %270 = sbr.rel (%p267) target = $region12
    $region11: #{_lambda_.1} parent=5 // pred_region
      %s271 = ssub.s32 %s16, 1
      // Predicated region
      $region13: #{_lambda_.1} parent=11 // pred_check
        %p272 = pneg %p63
      $region14: #{_lambda_.1} parent=11 // pred_check_branch
        %274 = sbr.rel (%p272) target = $region16
      $region15: #{_lambda_.1} parent=11 // pred_region
        _
      $region16: #{_lambda_.1} parent=11 // pred_fallthru
        _
      // Predicated region
      $region17: #{_lambda_.1} parent=11 // pred_check
        %p275 = pneg %p84
      $region18: #{_lambda_.1} parent=11 // pred_check_branch
        %277 = sbr.rel (%p275) target = $region20
      $region19: #{_lambda_.1} parent=11 // pred_region
        _
      $region20: #{_lambda_.1} parent=11 // pred_fallthru
        _
      // Predicated region
      $region21: #{_lambda_.1} parent=11 // pred_check
        %p278 = pneg %p105
      $region22: #{_lambda_.1} parent=11 // pred_check_branch
        %280 = sbr.rel (%p278) target = $region24
      $region23: #{_lambda_.1} parent=11 // pred_region
        _
      $region24: #{_lambda_.1} parent=11 // pred_fallthru
        _
      // Predicated region
      $region25: #{_lambda_.1} parent=11 // pred_check
        %p281 = pneg %p126
      $region26: #{_lambda_.1} parent=11 // pred_check_branch
        %283 = sbr.rel (%p281) target = $region28
      $region27: #{_lambda_.1} parent=11 // pred_region
        _
      $region28: #{_lambda_.1} parent=11 // pred_fallthru
        _
      // Predicated region
      $region29: #{_lambda_.1} parent=11 // pred_check
        %p284 = pneg %p147
      $region30: #{_lambda_.1} parent=11 // pred_check_branch
        %286 = sbr.rel (%p284) target = $region32
      $region31: #{_lambda_.1} parent=11 // pred_region
        _
      $region32: #{_lambda_.1} parent=11 // pred_fallthru
        _
      // Predicated region
      $region33: #{_lambda_.1} parent=11 // pred_check
        %p287 = pneg %p168
      $region34: #{_lambda_.1} parent=11 // pred_check_branch
        %289 = sbr.rel (%p287) target = $region36
      $region35: #{_lambda_.1} parent=11 // pred_region
        _
      $region36: #{_lambda_.1} parent=11 // pred_fallthru
        _
      // Predicated region
      $region37: #{_lambda_.1} parent=11 // pred_check
        %p290 = pneg %p189
      $region38: #{_lambda_.1} parent=11 // pred_check_branch
        %292 = sbr.rel (%p290) target = $region40
      $region39: #{_lambda_.1} parent=11 // pred_region
        _
      $region40: #{_lambda_.1} parent=11 // pred_fallthru
        _
      // Predicated region
      $region41: #{_lambda_.1} parent=11 // pred_check
        %p293 = pneg %p210
      $region42: #{_lambda_.1} parent=11 // pred_check_branch
        %295 = sbr.rel (%p293) target = $region44
      $region43: #{_lambda_.1} parent=11 // pred_region
        _
      $region44: #{_lambda_.1} parent=11 // pred_fallthru
        _
      // Predicated region
      $region45: #{_lambda_.1} parent=11 // pred_check
        %p296 = pneg %p231
      $region46: #{_lambda_.1} parent=11 // pred_check_branch
        %298 = sbr.rel (%p296) target = $region48
      $region47: #{_lambda_.1} parent=11 // pred_region
        _
      $region48: #{_lambda_.1} parent=11 // pred_fallthru
        _
    $region12: #{_lambda_.1} parent=5 // pred_fallthru
      _
    %p299 = scmp.lt.s32.totalorder %s16, 2
    // Predicated region
    $region49: #{_lambda_.1} parent=5 // pred_check
      %p300 = pneg %p299
    $region50: #{_lambda_.1} parent=5 // pred_check_branch
      %302 = sbr.rel (%p300) target = $region52
    $region51: #{_lambda_.1} parent=5 // pred_region
      // Predicated region
      $region53: #{_lambda_.1} parent=51 // pred_check
        %p303 = pneg %p36
      $region54: #{_lambda_.1} parent=51 // pred_check_branch
        %305 = sbr.rel (%p303) target = $region56
      $region55: #{_lambda_.1} parent=51 // pred_region
        %p306 = scmp.lt.s32.totalorder %s16, 1
        %s307 = scalar_select %p306, %s16, 1
        %s308 = smul.addr %s307, 4
        %s309 = smul.addr %s308, 8
        %s310 = scalar_lea.vmem %s0, %s309
      $region56: #{_lambda_.1} parent=51 // pred_fallthru
        _
    $region52: #{_lambda_.1} parent=5 // pred_fallthru
      _
    %p311 = scmp.le.s32.totalorder 1, %s16
    %p312 = scmp.lt.s32.totalorder %s16, 3
    %p313 = pnand %p311, %p312
    %p314 = pneg %p313
    // Predicated region
    $region57: #{_lambda_.1} parent=5 // pred_check
      _
    $region58: #{_lambda_.1} parent=5 // pred_check_branch
      %316 = sbr.rel (%p313) target = $region60
    $region59: #{_lambda_.1} parent=5 // pred_region
      %s317 = ssub.s32 %s16, 1
      %p318 = scmp.lt.s32.totalorder %s21, 1
      %s319 = scalar_select %p318, %s21, 1
      %s320 = smul.addr %s319, 4
      %s321 = smul.addr %s320, 8
      %s322 = scalar_lea.vmem %s0, %s321
      %p323 = pneg %p42
      %p324 = pneg %p39
      %p325 = pneg %p63
      %p326 = pneg %p60
      %p327 = pneg %p84
      %p328 = pneg %p81
      %p329 = pneg %p105
      %p330 = pneg %p102
      %p331 = pneg %p126
      %p332 = pneg %p123
      %p333 = pneg %p147
      %p334 = pneg %p144
      %p335 = pneg %p168
      %p336 = pneg %p165
      %p337 = pneg %p189
      %p338 = pneg %p186
      %p339 = pneg %p210
      %p340 = pneg %p207
      %p341 = pneg %p231
      %p342 = pneg %p228
      %p343 = pneg %p257
      %p344 = pneg %p254
      %p345 = scmp.lt.s32.totalorder %s21, 1
      %s346 = scalar_select %p345, %s21, 1
      %s347 = smul.addr %s346, 2
      %s348 = smul.addr %s347, 2
      %s349 = scalar_lea.vmem %s10, %s348
      %p350 = scmp.lt.s32.totalorder %s21, 1
      %s351 = scalar_select %p350, %s21, 1
      %s352 = smul.addr %s351, 4
      %s353 = smul.addr %s352, 8
      %s354 = scalar_lea.vmem %s0, %s353
      %p355 = scmp.lt.s32.totalorder %s21, 1
      %s356 = scalar_select %p355, %s21, 1
      %s357 = smul.addr %s356, 2
      %s358 = smul.addr %s357, 2
      %s359 = scalar_lea.vmem %s10, %s358
      %v360 = vld [vmem:[%s354] sm:$0xff]
      %v361 = vld [vmem:[%s354 + $0x8] sm:$0xff]
      %v362 = vld [vmem:[%s354 + $0x10] sm:$0xff]
      %v363 = vld [vmem:[%s354 + $0x18] sm:$0xff]
      %v364 = vld [vmem:[%s1] sm:$0xff]
      %v365 = vld [vmem:[%s1 + $0x8] sm:$0x1f]
      %v366 = vld [vmem:[%s2] sm:$0xff]
      %v367 = vld [vmem:[%s2 + $0x8] sm:$0x1f]
      %369 = vset.pattern.permute.xlu0 0
      %370 = vperm.xlu0 %369, %v366
      %v371 = vpop.permute.xlu0 %370
      %374 = vset.pattern.permute.xlu0 0
      %375 = vperm.xlu0 %374, %v367
      %v376 = vpop.permute.xlu0 %375
      %vm378 = vcmask 130048
      %v380 = vsel %vm378, %v364, 0
      %v383 = vsel %vm378, %v365, 0
      %385 = vmatpush.msra.mxu0 0.0
      %386 = vmatpush.msra.mxu0 0.0
      %387 = vmatpush.msra.mxu0 0.0
      %388 = vmatpush.msra.mxu0 0.0
      %389 = vmatpush.msra.mxu0 0.0
      %390 = vmatpush.msra.mxu0 0.0
      %391 = vmatpush.msra.mxu0 0.0
      %392 = vmatpush.msra.mxu0 0.0
      %393 = vmatpush.msra.mxu0 0.0
      %394 = vmatpush.msra.mxu0 0.0
      %395 = vmatpush.msra.mxu0 0.0
      %396 = vmatpush.msra.mxu0 0.0
      %397 = vmatpush.msra.mxu0 0.0
      %398 = vmatpush.msra.mxu0 0.0
      %399 = vmatpush.msra.mxu0 %v362
      %400 = vmatpush.msra.mxu0 %v360
      %401 = vmatmul.f32.gmra.mxu0 %v380
      %v402 = vpop.f32.mrf.mxu0
      %v403 = vadd.f32 %v371, %v402
      %404 = vmatmul.f32.gmra.mxu0 %v383
      %v405 = vpop.f32.mrf.mxu0
      %v406 = vadd.f32 %v376, %v405
      %407 = vdwg.mxu0
      %408 = vmatpush.msra.mxu0 0.0
      %409 = vmatpush.msra.mxu0 0.0
      %410 = vmatpush.msra.mxu0 0.0
      %411 = vmatpush.msra.mxu0 0.0
      %412 = vmatpush.msra.mxu0 0.0
      %413 = vmatpush.msra.mxu0 0.0
      %414 = vmatpush.msra.mxu0 0.0
      %415 = vmatpush.msra.mxu0 0.0
      %416 = vmatpush.msra.mxu0 0.0
      %417 = vmatpush.msra.mxu0 0.0
      %418 = vmatpush.msra.mxu0 0.0
      %419 = vmatpush.msra.mxu0 0.0
      %420 = vmatpush.msra.mxu0 0.0
      %421 = vmatpush.msra.mxu0 0.0
      %422 = vmatpush.msra.mxu0 %v363
      %423 = vmatpush.msra.mxu0 %v361
      %424 = vmatmul.f32.gmra.mxu0 %v380
      %v425 = vpop.f32.mrf.mxu0
      %v426 = vadd.f32 %v371, %v425
      %427 = vmatmul.f32.gmra.mxu0 %v383
      %v428 = vpop.f32.mrf.mxu0
      %v429 = vadd.f32 %v376, %v428
      %430 = vdwg.mxu0
      %v431 = vmax.f32 %v403, 0.0
      %v432 = vmax.f32 %v426, 0.0
      %v433 = vmax.f32 %v406, 0.0
      %v434 = vmax.f32 %v429, 0.0
      %v435 = vld [vmem:[%s3] sm:$0xff]
      %v436 = vld [vmem:[%s3 + $0x8] sm:$0x1]
      %v437 = vld [vmem:[%s4] sm:$0xff]
      %v438 = vld [vmem:[%s4 + $0x8] sm:$0x1]
      %440 = vset.pattern.permute.xlu0 0
      %441 = vperm.xlu0 %440, %v437
      %v442 = vpop.permute.xlu0 %441
      %445 = vset.pattern.permute.xlu0 0
      %446 = vperm.xlu0 %445, %v438
      %v447 = vpop.permute.xlu0 %446
      %vm449 = vcmask 105472
      %v451 = vsel %vm449, %v435, 0
      %v454 = vsel %vm449, %v436, 0
      %vm456 = vcmask 1044480
      %v458 = vsel %vm456, %v433, 0
      %v461 = vsel %vm456, %v434, 0
      %463 = vmatpush.msra.mxu0 0.0
      %464 = vmatpush.msra.mxu0 0.0
      %465 = vmatpush.msra.mxu0 0.0
      %466 = vmatpush.msra.mxu0 0.0
      %467 = vmatpush.msra.mxu0 0.0
      %468 = vmatpush.msra.mxu0 0.0
      %469 = vmatpush.msra.mxu0 0.0
      %470 = vmatpush.msra.mxu0 0.0
      %471 = vmatpush.msra.mxu0 0.0
      %472 = vmatpush.msra.mxu0 0.0
      %473 = vmatpush.msra.mxu0 0.0
      %474 = vmatpush.msra.mxu0 0.0
      %475 = vmatpush.msra.mxu0 0.0
      %476 = vmatpush.msra.mxu0 0.0
      %477 = vmatpush.msra.mxu0 %v458
      %478 = vmatpush.msra.mxu0 %v431
      %479 = vmatmul.f32.gmra.mxu0 %v451
      %v480 = vpop.f32.mrf.mxu0
      %v481 = vadd.f32 %v442, %v480
      %482 = vmatmul.f32.gmra.mxu0 %v454
      %v483 = vpop.f32.mrf.mxu0
      %v484 = vadd.f32 %v447, %v483
      %485 = vdwg.mxu0
      %486 = vmatpush.msra.mxu0 0.0
      %487 = vmatpush.msra.mxu0 0.0
      %488 = vmatpush.msra.mxu0 0.0
      %489 = vmatpush.msra.mxu0 0.0
      %490 = vmatpush.msra.mxu0 0.0
      %491 = vmatpush.msra.mxu0 0.0
      %492 = vmatpush.msra.mxu0 0.0
      %493 = vmatpush.msra.mxu0 0.0
      %494 = vmatpush.msra.mxu0 0.0
      %495 = vmatpush.msra.mxu0 0.0
      %496 = vmatpush.msra.mxu0 0.0
      %497 = vmatpush.msra.mxu0 0.0
      %498 = vmatpush.msra.mxu0 0.0
      %499 = vmatpush.msra.mxu0 0.0
      %500 = vmatpush.msra.mxu0 %v461
      %501 = vmatpush.msra.mxu0 %v432
      %502 = vmatmul.f32.gmra.mxu0 %v451
      %v503 = vpop.f32.mrf.mxu0
      %v504 = vadd.f32 %v442, %v503
      %505 = vmatmul.f32.gmra.mxu0 %v454
      %v506 = vpop.f32.mrf.mxu0
      %v507 = vadd.f32 %v447, %v506
      %508 = vdwg.mxu0
      %v509 = vmax.f32 %v481, 0.0
      %v510 = vmax.f32 %v504, 0.0
      %v511 = vmax.f32 %v484, 0.0
      %v512 = vmax.f32 %v507, 0.0
      %s513 = scalar_lea.vmem %s5, 32
      %v514 = vld [vmem:[%s513] sm:$0x1f]
      %v515 = vld [vmem:[%s6] sm:$0x1f]
      %517 = vset.pattern.permute.xlu0 0
      %518 = vperm.xlu0 %517, %v515
      %v519 = vpop.permute.xlu0 %518
      %vm521 = vcmask 72704
      %v523 = vsel %vm521, %v514, 0
      %vm525 = vcmask 1040384
      %v527 = vsel %vm525, %v511, 0
      %v530 = vsel %vm525, %v512, 0
      %532 = vmatpush.msra.mxu0 0.0
      %533 = vmatpush.msra.mxu0 0.0
      %534 = vmatpush.msra.mxu0 0.0
      %535 = vmatpush.msra.mxu0 0.0
      %536 = vmatpush.msra.mxu0 0.0
      %537 = vmatpush.msra.mxu0 0.0
      %538 = vmatpush.msra.mxu0 0.0
      %539 = vmatpush.msra.mxu0 0.0
      %540 = vmatpush.msra.mxu0 0.0
      %541 = vmatpush.msra.mxu0 0.0
      %542 = vmatpush.msra.mxu0 0.0
      %543 = vmatpush.msra.mxu0 0.0
      %544 = vmatpush.msra.mxu0 0.0
      %545 = vmatpush.msra.mxu0 0.0
      %546 = vmatpush.msra.mxu0 %v527
      %547 = vmatpush.msra.mxu0 %v509
      %548 = vmatmul.f32.gmra.mxu0 %v523
      %v549 = vpop.f32.mrf.mxu0
      %v550 = vadd.f32 %v519, %v549
      %551 = vdwg.mxu0
      %552 = vmatpush.msra.mxu0 0.0
      %553 = vmatpush.msra.mxu0 0.0
      %554 = vmatpush.msra.mxu0 0.0
      %555 = vmatpush.msra.mxu0 0.0
      %556 = vmatpush.msra.mxu0 0.0
      %557 = vmatpush.msra.mxu0 0.0
      %558 = vmatpush.msra.mxu0 0.0
      %559 = vmatpush.msra.mxu0 0.0
      %560 = vmatpush.msra.mxu0 0.0
      %561 = vmatpush.msra.mxu0 0.0
      %562 = vmatpush.msra.mxu0 0.0
      %563 = vmatpush.msra.mxu0 0.0
      %564 = vmatpush.msra.mxu0 0.0
      %565 = vmatpush.msra.mxu0 0.0
      %566 = vmatpush.msra.mxu0 %v530
      %567 = vmatpush.msra.mxu0 %v510
      %568 = vmatmul.f32.gmra.mxu0 %v523
      %v569 = vpop.f32.mrf.mxu0
      %v570 = vadd.f32 %v519, %v569
      %571 = vdwg.mxu0
      %572 = vrot.lane.b32.xlu0 %v509, 17
      %v573 = vpop.permute.xlu0 %572
      %574 = vrot.lane.b32.xlu0 %v511, 17
      %v575 = vpop.permute.xlu0 %574
      %576 = vrot.lane.b32.xlu0 %v510, 17
      %v577 = vpop.permute.xlu0 %576
      %578 = vrot.lane.b32.xlu0 %v512, 17
      %v579 = vpop.permute.xlu0 %578
      %v580 = vlaneseq
      %v581 = vand.u32 %v580, 127
      %vm582 = vcmp.lt.s32.totalorder %v581, 17
      %v583 = vsel %vm582, %v573, %v577
      %v584 = vsel %vm582, %v575, %v579
      %v585 = vsel %vm582, %v577, %v573
      %v586 = vsel %vm582, %v579, %v575
      %v587 = vld [vmem:[%s5] sm:$0x1f]
      %v589 = vsel %vm521, %v587, 0
      %v592 = vsel %vm525, %v586, 0
      %v595 = vsel %vm525, %v584, 0
      %597 = vmatpush.msra.mxu0 0.0
      %598 = vmatpush.msra.mxu0 0.0
      %599 = vmatpush.msra.mxu0 0.0
      %600 = vmatpush.msra.mxu0 0.0
      %601 = vmatpush.msra.mxu0 0.0
      %602 = vmatpush.msra.mxu0 0.0
      %603 = vmatpush.msra.mxu0 0.0
      %604 = vmatpush.msra.mxu0 0.0
      %605 = vmatpush.msra.mxu0 0.0
      %606 = vmatpush.msra.mxu0 0.0
      %607 = vmatpush.msra.mxu0 0.0
      %608 = vmatpush.msra.mxu0 0.0
      %609 = vmatpush.msra.mxu0 0.0
      %610 = vmatpush.msra.mxu0 0.0
      %611 = vmatpush.msra.mxu0 %v592
      %612 = vmatpush.msra.mxu0 %v585
      %613 = vmatmul.f32.gmra.mxu0 %v589
      %v614 = vpop.f32.mrf.mxu0
      %v615 = vadd.f32 0.0, %v614
      %616 = vdwg.mxu0
      %617 = vmatpush.msra.mxu0 0.0
      %618 = vmatpush.msra.mxu0 0.0
      %619 = vmatpush.msra.mxu0 0.0
      %620 = vmatpush.msra.mxu0 0.0
      %621 = vmatpush.msra.mxu0 0.0
      %622 = vmatpush.msra.mxu0 0.0
      %623 = vmatpush.msra.mxu0 0.0
      %624 = vmatpush.msra.mxu0 0.0
      %625 = vmatpush.msra.mxu0 0.0
      %626 = vmatpush.msra.mxu0 0.0
      %627 = vmatpush.msra.mxu0 0.0
      %628 = vmatpush.msra.mxu0 0.0
      %629 = vmatpush.msra.mxu0 0.0
      %630 = vmatpush.msra.mxu0 0.0
      %631 = vmatpush.msra.mxu0 %v595
      %632 = vmatpush.msra.mxu0 %v583
      %633 = vmatmul.f32.gmra.mxu0 %v589
      %v634 = vpop.f32.mrf.mxu0
      %v635 = vadd.f32 0.0, %v634
      %636 = vdwg.mxu0
      %v637 = vld [vmem:[%s7] sm:$0x3]
      %v639 = vperm.slane %v637, 0
      %v640 = vperm.slane %v637, 1
      %v643 = vmul.f32 %v615, %v639
      %v644 = vmul.f32 %v635, %v640
      %v645 = vadd.f32 %v550, %v643
      %v646 = vadd.f32 %v570, %v644
      %647 = vrot.lane.b32.xlu0 %v509, 16
      %v648 = vpop.permute.xlu0 %647
      %649 = vrot.lane.b32.xlu0 %v511, 16
      %v650 = vpop.permute.xlu0 %649
      %651 = vrot.lane.b32.xlu0 %v510, 16
      %v652 = vpop.permute.xlu0 %651
      %653 = vrot.lane.b32.xlu0 %v512, 16
      %v654 = vpop.permute.xlu0 %653
      %vm655 = vcmp.lt.s32.totalorder %v581, 16
      %v656 = vsel %vm655, %v648, %v652
      %v657 = vsel %vm655, %v650, %v654
      %v658 = vsel %vm655, %v652, %v648
      %v659 = vsel %vm655, %v654, %v650
      %s660 = scalar_lea.vmem %s5, 8
      %v661 = vld [vmem:[%s660] sm:$0x1f]
      %v663 = vsel %vm521, %v661, 0
      %v666 = vsel %vm525, %v659, 0
      %v669 = vsel %vm525, %v657, 0
      %671 = vmatpush.msra.mxu0 0.0
      %672 = vmatpush.msra.mxu0 0.0
      %673 = vmatpush.msra.mxu0 0.0
      %674 = vmatpush.msra.mxu0 0.0
      %675 = vmatpush.msra.mxu0 0.0
      %676 = vmatpush.msra.mxu0 0.0
      %677 = vmatpush.msra.mxu0 0.0
      %678 = vmatpush.msra.mxu0 0.0
      %679 = vmatpush.msra.mxu0 0.0
      %680 = vmatpush.msra.mxu0 0.0
      %681 = vmatpush.msra.mxu0 0.0
      %682 = vmatpush.msra.mxu0 0.0
      %683 = vmatpush.msra.mxu0 0.0
      %684 = vmatpush.msra.mxu0 0.0
      %685 = vmatpush.msra.mxu0 %v666
      %686 = vmatpush.msra.mxu0 %v658
      %687 = vmatmul.f32.gmra.mxu0 %v663
      %v688 = vpop.f32.mrf.mxu0
      %v689 = vadd.f32 0.0, %v688
      %690 = vdwg.mxu0
      %691 = vmatpush.msra.mxu0 0.0
      %692 = vmatpush.msra.mxu0 0.0
      %693 = vmatpush.msra.mxu0 0.0
      %694 = vmatpush.msra.mxu0 0.0
      %695 = vmatpush.msra.mxu0 0.0
      %696 = vmatpush.msra.mxu0 0.0
      %697 = vmatpush.msra.mxu0 0.0
      %698 = vmatpush.msra.mxu0 0.0
      %699 = vmatpush.msra.mxu0 0.0
      %700 = vmatpush.msra.mxu0 0.0
      %701 = vmatpush.msra.mxu0 0.0
      %702 = vmatpush.msra.mxu0 0.0
      %703 = vmatpush.msra.mxu0 0.0
      %704 = vmatpush.msra.mxu0 0.0
      %705 = vmatpush.msra.mxu0 %v669
      %706 = vmatpush.msra.mxu0 %v656
      %707 = vmatmul.f32.gmra.mxu0 %v663
      %v708 = vpop.f32.mrf.mxu0
      %v709 = vadd.f32 0.0, %v708
      %710 = vdwg.mxu0
      %s711 = scalar_lea.vmem %s7, 2
      %v712 = vld [vmem:[%s711] sm:$0x3]
      %v714 = vperm.slane %v712, 0
      %v715 = vperm.slane %v712, 1
      %v718 = vmul.f32 %v689, %v714
      %v719 = vmul.f32 %v709, %v715
      %v720 = vadd.f32 %v645, %v718
      %v721 = vadd.f32 %v646, %v719
      %722 = vrot.lane.b32.xlu0 %v509, 15
      %v723 = vpop.permute.xlu0 %722
      %724 = vrot.lane.b32.xlu0 %v511, 15
      %v725 = vpop.permute.xlu0 %724
      %726 = vrot.lane.b32.xlu0 %v510, 15
      %v727 = vpop.permute.xlu0 %726
      %728 = vrot.lane.b32.xlu0 %v512, 15
      %v729 = vpop.permute.xlu0 %728
      %vm730 = vcmp.lt.s32.totalorder %v581, 15
      %v731 = vsel %vm730, %v723, %v727
      %v732 = vsel %vm730, %v725, %v729
      %v733 = vsel %vm730, %v727, %v723
      %v734 = vsel %vm730, %v729, %v725
      %s735 = scalar_lea.vmem %s5, 16
      %v736 = vld [vmem:[%s735] sm:$0x1f]
      %v738 = vsel %vm521, %v736, 0
      %v741 = vsel %vm525, %v734, 0
      %v744 = vsel %vm525, %v732, 0
      %746 = vmatpush.msra.mxu0 0.0
      %747 = vmatpush.msra.mxu0 0.0
      %748 = vmatpush.msra.mxu0 0.0
      %749 = vmatpush.msra.mxu0 0.0
      %750 = vmatpush.msra.mxu0 0.0
      %751 = vmatpush.msra.mxu0 0.0
      %752 = vmatpush.msra.mxu0 0.0
      %753 = vmatpush.msra.mxu0 0.0
      %754 = vmatpush.msra.mxu0 0.0
      %755 = vmatpush.msra.mxu0 0.0
      %756 = vmatpush.msra.mxu0 0.0
      %757 = vmatpush.msra.mxu0 0.0
      %758 = vmatpush.msra.mxu0 0.0
      %759 = vmatpush.msra.mxu0 0.0
      %760 = vmatpush.msra.mxu0 %v741
      %761 = vmatpush.msra.mxu0 %v733
      %762 = vmatmul.f32.gmra.mxu0 %v738
      %v763 = vpop.f32.mrf.mxu0
      %v764 = vadd.f32 0.0, %v763
      %765 = vdwg.mxu0
      %766 = vmatpush.msra.mxu0 0.0
      %767 = vmatpush.msra.mxu0 0.0
      %768 = vmatpush.msra.mxu0 0.0
      %769 = vmatpush.msra.mxu0 0.0
      %770 = vmatpush.msra.mxu0 0.0
      %771 = vmatpush.msra.mxu0 0.0
      %772 = vmatpush.msra.mxu0 0.0
      %773 = vmatpush.msra.mxu0 0.0
      %774 = vmatpush.msra.mxu0 0.0
      %775 = vmatpush.msra.mxu0 0.0
      %776 = vmatpush.msra.mxu0 0.0
      %777 = vmatpush.msra.mxu0 0.0
      %778 = vmatpush.msra.mxu0 0.0
      %779 = vmatpush.msra.mxu0 0.0
      %780 = vmatpush.msra.mxu0 %v744
      %781 = vmatpush.msra.mxu0 %v731
      %782 = vmatmul.f32.gmra.mxu0 %v738
      %v783 = vpop.f32.mrf.mxu0
      %v784 = vadd.f32 0.0, %v783
      %785 = vdwg.mxu0
      %s786 = scalar_lea.vmem %s7, 4
      %v787 = vld [vmem:[%s786] sm:$0x3]
      %v789 = vperm.slane %v787, 0
      %v790 = vperm.slane %v787, 1
      %v793 = vmul.f32 %v764, %v789
      %v794 = vmul.f32 %v784, %v790
      %v795 = vadd.f32 %v720, %v793
      %v796 = vadd.f32 %v721, %v794
      %797 = vrot.lane.b32.xlu0 %v509, 1
      %v798 = vpop.permute.xlu0 %797
      %799 = vrot.lane.b32.xlu0 %v511, 1
      %v800 = vpop.permute.xlu0 %799
      %801 = vrot.lane.b32.xlu0 %v510, 1
      %v802 = vpop.permute.xlu0 %801
      %803 = vrot.lane.b32.xlu0 %v512, 1
      %v804 = vpop.permute.xlu0 %803
      %vm805 = vcmp.lt.s32.totalorder %v581, 1
      %v806 = vsel %vm805, %v798, %v802
      %v807 = vsel %vm805, %v800, %v804
      %v808 = vsel %vm805, %v802, %v798
      %v809 = vsel %vm805, %v804, %v800
      %s810 = scalar_lea.vmem %s5, 24
      %v811 = vld [vmem:[%s810] sm:$0x1f]
      %v813 = vsel %vm521, %v811, 0
      %v816 = vsel %vm525, %v809, 0
      %v819 = vsel %vm525, %v807, 0
      %821 = vmatpush.msra.mxu0 0.0
      %822 = vmatpush.msra.mxu0 0.0
      %823 = vmatpush.msra.mxu0 0.0
      %824 = vmatpush.msra.mxu0 0.0
      %825 = vmatpush.msra.mxu0 0.0
      %826 = vmatpush.msra.mxu0 0.0
      %827 = vmatpush.msra.mxu0 0.0
      %828 = vmatpush.msra.mxu0 0.0
      %829 = vmatpush.msra.mxu0 0.0
      %830 = vmatpush.msra.mxu0 0.0
      %831 = vmatpush.msra.mxu0 0.0
      %832 = vmatpush.msra.mxu0 0.0
      %833 = vmatpush.msra.mxu0 0.0
      %834 = vmatpush.msra.mxu0 0.0
      %835 = vmatpush.msra.mxu0 %v816
      %836 = vmatpush.msra.mxu0 %v808
      %837 = vmatmul.f32.gmra.mxu0 %v813
      %v838 = vpop.f32.mrf.mxu0
      %v839 = vadd.f32 0.0, %v838
      %840 = vdwg.mxu0
      %841 = vmatpush.msra.mxu0 0.0
      %842 = vmatpush.msra.mxu0 0.0
      %843 = vmatpush.msra.mxu0 0.0
      %844 = vmatpush.msra.mxu0 0.0
      %845 = vmatpush.msra.mxu0 0.0
      %846 = vmatpush.msra.mxu0 0.0
      %847 = vmatpush.msra.mxu0 0.0
      %848 = vmatpush.msra.mxu0 0.0
      %849 = vmatpush.msra.mxu0 0.0
      %850 = vmatpush.msra.mxu0 0.0
      %851 = vmatpush.msra.mxu0 0.0
      %852 = vmatpush.msra.mxu0 0.0
      %853 = vmatpush.msra.mxu0 0.0
      %854 = vmatpush.msra.mxu0 0.0
      %855 = vmatpush.msra.mxu0 %v819
      %856 = vmatpush.msra.mxu0 %v806
      %857 = vmatmul.f32.gmra.mxu0 %v813
      %v858 = vpop.f32.mrf.mxu0
      %v859 = vadd.f32 0.0, %v858
      %860 = vdwg.mxu0
      %s861 = scalar_lea.vmem %s7, 6
      %v862 = vld [vmem:[%s861] sm:$0x3]
      %v864 = vperm.slane %v862, 0
      %v865 = vperm.slane %v862, 1
      %v868 = vmul.f32 %v839, %v864
      %v869 = vmul.f32 %v859, %v865
      %v870 = vadd.f32 %v795, %v868
      %v871 = vadd.f32 %v796, %v869
      %872 = vrot.lane.b32.xlu0 %v509, 127
      %v873 = vpop.permute.xlu0 %872
      %874 = vrot.lane.b32.xlu0 %v511, 127
      %v875 = vpop.permute.xlu0 %874
      %876 = vrot.lane.b32.xlu0 %v510, 127
      %v877 = vpop.permute.xlu0 %876
      %878 = vrot.lane.b32.xlu0 %v512, 127
      %v879 = vpop.permute.xlu0 %878
      %vm880 = vcmp.lt.s32.totalorder %v581, 127
      %v881 = vsel %vm880, %v873, %v877
      %v882 = vsel %vm880, %v875, %v879
      %v883 = vsel %vm880, %v877, %v873
      %v884 = vsel %vm880, %v879, %v875
      %s885 = scalar_lea.vmem %s5, 40
      %v886 = vld [vmem:[%s885] sm:$0x1f]
      %v888 = vsel %vm521, %v886, 0
      %v891 = vsel %vm525, %v882, 0
      %v894 = vsel %vm525, %v884, 0
      %896 = vmatpush.msra.mxu0 0.0
      %897 = vmatpush.msra.mxu0 0.0
      %898 = vmatpush.msra.mxu0 0.0
      %899 = vmatpush.msra.mxu0 0.0
      %900 = vmatpush.msra.mxu0 0.0
      %901 = vmatpush.msra.mxu0 0.0
      %902 = vmatpush.msra.mxu0 0.0
      %903 = vmatpush.msra.mxu0 0.0
      %904 = vmatpush.msra.mxu0 0.0
      %905 = vmatpush.msra.mxu0 0.0
      %906 = vmatpush.msra.mxu0 0.0
      %907 = vmatpush.msra.mxu0 0.0
      %908 = vmatpush.msra.mxu0 0.0
      %909 = vmatpush.msra.mxu0 0.0
      %910 = vmatpush.msra.mxu0 %v891
      %911 = vmatpush.msra.mxu0 %v881
      %912 = vmatmul.f32.gmra.mxu0 %v888
      %v913 = vpop.f32.mrf.mxu0
      %v914 = vadd.f32 0.0, %v913
      %915 = vdwg.mxu0
      %916 = vmatpush.msra.mxu0 0.0
      %917 = vmatpush.msra.mxu0 0.0
      %918 = vmatpush.msra.mxu0 0.0
      %919 = vmatpush.msra.mxu0 0.0
      %920 = vmatpush.msra.mxu0 0.0
      %921 = vmatpush.msra.mxu0 0.0
      %922 = vmatpush.msra.mxu0 0.0
      %923 = vmatpush.msra.mxu0 0.0
      %924 = vmatpush.msra.mxu0 0.0
      %925 = vmatpush.msra.mxu0 0.0
      %926 = vmatpush.msra.mxu0 0.0
      %927 = vmatpush.msra.mxu0 0.0
      %928 = vmatpush.msra.mxu0 0.0
      %929 = vmatpush.msra.mxu0 0.0
      %930 = vmatpush.msra.mxu0 %v894
      %931 = vmatpush.msra.mxu0 %v883
      %932 = vmatmul.f32.gmra.mxu0 %v888
      %v933 = vpop.f32.mrf.mxu0
      %v934 = vadd.f32 0.0, %v933
      %935 = vdwg.mxu0
      %s936 = scalar_lea.vmem %s7, 8
      %v937 = vld [vmem:[%s936] sm:$0x3]
      %v939 = vperm.slane %v937, 0
      %v940 = vperm.slane %v937, 1
      %v943 = vmul.f32 %v914, %v939
      %v944 = vmul.f32 %v934, %v940
      %v945 = vadd.f32 %v870, %v943
      %v946 = vadd.f32 %v871, %v944
      %947 = vrot.lane.b32.xlu0 %v509, 113
      %v948 = vpop.permute.xlu0 %947
      %949 = vrot.lane.b32.xlu0 %v511, 113
      %v950 = vpop.permute.xlu0 %949
      %951 = vrot.lane.b32.xlu0 %v510, 113
      %v952 = vpop.permute.xlu0 %951
      %953 = vrot.lane.b32.xlu0 %v512, 113
      %v954 = vpop.permute.xlu0 %953
      %vm955 = vcmp.lt.s32.totalorder %v581, 113
      %v956 = vsel %vm955, %v948, %v952
      %v957 = vsel %vm955, %v950, %v954
      %v958 = vsel %vm955, %v952, %v948
      %v959 = vsel %vm955, %v954, %v950
      %s960 = scalar_lea.vmem %s5, 48
      %v961 = vld [vmem:[%s960] sm:$0x1f]
      %v963 = vsel %vm521, %v961, 0
      %v966 = vsel %vm525, %v957, 0
      %v969 = vsel %vm525, %v959, 0
      %971 = vmatpush.msra.mxu0 0.0
      %972 = vmatpush.msra.mxu0 0.0
      %973 = vmatpush.msra.mxu0 0.0
      %974 = vmatpush.msra.mxu0 0.0
      %975 = vmatpush.msra.mxu0 0.0
      %976 = vmatpush.msra.mxu0 0.0
      %977 = vmatpush.msra.mxu0 0.0
      %978 = vmatpush.msra.mxu0 0.0
      %979 = vmatpush.msra.mxu0 0.0
      %980 = vmatpush.msra.mxu0 0.0
      %981 = vmatpush.msra.mxu0 0.0
      %982 = vmatpush.msra.mxu0 0.0
      %983 = vmatpush.msra.mxu0 0.0
      %984 = vmatpush.msra.mxu0 0.0
      %985 = vmatpush.msra.mxu0 %v966
      %986 = vmatpush.msra.mxu0 %v956
      %987 = vmatmul.f32.gmra.mxu0 %v963
      %v988 = vpop.f32.mrf.mxu0
      %v989 = vadd.f32 0.0, %v988
      %990 = vdwg.mxu0
      %991 = vmatpush.msra.mxu0 0.0
      %992 = vmatpush.msra.mxu0 0.0
      %993 = vmatpush.msra.mxu0 0.0
      %994 = vmatpush.msra.mxu0 0.0
      %995 = vmatpush.msra.mxu0 0.0
      %996 = vmatpush.msra.mxu0 0.0
      %997 = vmatpush.msra.mxu0 0.0
      %998 = vmatpush.msra.mxu0 0.0
      %999 = vmatpush.msra.mxu0 0.0
      %1000 = vmatpush.msra.mxu0 0.0
      %1001 = vmatpush.msra.mxu0 0.0
      %1002 = vmatpush.msra.mxu0 0.0
      %1003 = vmatpush.msra.mxu0 0.0
      %1004 = vmatpush.msra.mxu0 0.0
      %1005 = vmatpush.msra.mxu0 %v969
      %1006 = vmatpush.msra.mxu0 %v958
      %1007 = vmatmul.f32.gmra.mxu0 %v963
      %v1008 = vpop.f32.mrf.mxu0
      %v1009 = vadd.f32 0.0, %v1008
      %1010 = vdwg.mxu0
      %s1011 = scalar_lea.vmem %s7, 10
      %v1012 = vld [vmem:[%s1011] sm:$0x3]
      %v1014 = vperm.slane %v1012, 0
      %v1015 = vperm.slane %v1012, 1
      %v1018 = vmul.f32 %v989, %v1014
      %v1019 = vmul.f32 %v1009, %v1015
      %v1020 = vadd.f32 %v945, %v1018
      %v1021 = vadd.f32 %v946, %v1019
      %1022 = vrot.lane.b32.xlu0 %v509, 112
      %v1023 = vpop.permute.xlu0 %1022
      %1024 = vrot.lane.b32.xlu0 %v511, 112
      %v1025 = vpop.permute.xlu0 %1024
      %1026 = vrot.lane.b32.xlu0 %v510, 112
      %v1027 = vpop.permute.xlu0 %1026
      %1028 = vrot.lane.b32.xlu0 %v512, 112
      %v1029 = vpop.permute.xlu0 %1028
      %vm1030 = vcmp.lt.s32.totalorder %v581, 112
      %v1031 = vsel %vm1030, %v1023, %v1027
      %v1032 = vsel %vm1030, %v1025, %v1029
      %v1033 = vsel %vm1030, %v1027, %v1023
      %v1034 = vsel %vm1030, %v1029, %v1025
      %s1035 = scalar_lea.vmem %s5, 56
      %v1036 = vld [vmem:[%s1035] sm:$0x1f]
      %v1038 = vsel %vm521, %v1036, 0
      %v1041 = vsel %vm525, %v1032, 0
      %v1044 = vsel %vm525, %v1034, 0
      %1046 = vmatpush.msra.mxu0 0.0
      %1047 = vmatpush.msra.mxu0 0.0
      %1048 = vmatpush.msra.mxu0 0.0
      %1049 = vmatpush.msra.mxu0 0.0
      %1050 = vmatpush.msra.mxu0 0.0
      %1051 = vmatpush.msra.mxu0 0.0
      %1052 = vmatpush.msra.mxu0 0.0
      %1053 = vmatpush.msra.mxu0 0.0
      %1054 = vmatpush.msra.mxu0 0.0
      %1055 = vmatpush.msra.mxu0 0.0
      %1056 = vmatpush.msra.mxu0 0.0
      %1057 = vmatpush.msra.mxu0 0.0
      %1058 = vmatpush.msra.mxu0 0.0
      %1059 = vmatpush.msra.mxu0 0.0
      %1060 = vmatpush.msra.mxu0 %v1041
      %1061 = vmatpush.msra.mxu0 %v1031
      %1062 = vmatmul.f32.gmra.mxu0 %v1038
      %v1063 = vpop.f32.mrf.mxu0
      %v1064 = vadd.f32 0.0, %v1063
      %1065 = vdwg.mxu0
      %1066 = vmatpush.msra.mxu0 0.0
      %1067 = vmatpush.msra.mxu0 0.0
      %1068 = vmatpush.msra.mxu0 0.0
      %1069 = vmatpush.msra.mxu0 0.0
      %1070 = vmatpush.msra.mxu0 0.0
      %1071 = vmatpush.msra.mxu0 0.0
      %1072 = vmatpush.msra.mxu0 0.0
      %1073 = vmatpush.msra.mxu0 0.0
      %1074 = vmatpush.msra.mxu0 0.0
      %1075 = vmatpush.msra.mxu0 0.0
      %1076 = vmatpush.msra.mxu0 0.0
      %1077 = vmatpush.msra.mxu0 0.0
      %1078 = vmatpush.msra.mxu0 0.0
      %1079 = vmatpush.msra.mxu0 0.0
      %1080 = vmatpush.msra.mxu0 %v1044
      %1081 = vmatpush.msra.mxu0 %v1033
      %1082 = vmatmul.f32.gmra.mxu0 %v1038
      %v1083 = vpop.f32.mrf.mxu0
      %v1084 = vadd.f32 0.0, %v1083
      %1085 = vdwg.mxu0
      %s1086 = scalar_lea.vmem %s7, 12
      %v1087 = vld [vmem:[%s1086] sm:$0x3]
      %v1089 = vperm.slane %v1087, 0
      %v1090 = vperm.slane %v1087, 1
      %v1093 = vmul.f32 %v1064, %v1089
      %v1094 = vmul.f32 %v1084, %v1090
      %v1095 = vadd.f32 %v1020, %v1093
      %v1096 = vadd.f32 %v1021, %v1094
      %1097 = vrot.lane.b32.xlu0 %v509, 111
      %v1098 = vpop.permute.xlu0 %1097
      %1099 = vrot.lane.b32.xlu0 %v511, 111
      %v1100 = vpop.permute.xlu0 %1099
      %1101 = vrot.lane.b32.xlu0 %v510, 111
      %v1102 = vpop.permute.xlu0 %1101
      %1103 = vrot.lane.b32.xlu0 %v512, 111
      %v1104 = vpop.permute.xlu0 %1103
      %vm1105 = vcmp.lt.s32.totalorder %v581, 111
      %v1106 = vsel %vm1105, %v1098, %v1102
      %v1107 = vsel %vm1105, %v1100, %v1104
      %v1108 = vsel %vm1105, %v1102, %v1098
      %v1109 = vsel %vm1105, %v1104, %v1100
      %s1110 = scalar_lea.vmem %s5, 64
      %v1111 = vld [vmem:[%s1110] sm:$0x1f]
      %v1113 = vsel %vm521, %v1111, 0
      %v1116 = vsel %vm525, %v1107, 0
      %v1119 = vsel %vm525, %v1109, 0
      %1121 = vmatpush.msra.mxu0 0.0
      %1122 = vmatpush.msra.mxu0 0.0
      %1123 = vmatpush.msra.mxu0 0.0
      %1124 = vmatpush.msra.mxu0 0.0
      %1125 = vmatpush.msra.mxu0 0.0
      %1126 = vmatpush.msra.mxu0 0.0
      %1127 = vmatpush.msra.mxu0 0.0
      %1128 = vmatpush.msra.mxu0 0.0
      %1129 = vmatpush.msra.mxu0 0.0
      %1130 = vmatpush.msra.mxu0 0.0
      %1131 = vmatpush.msra.mxu0 0.0
      %1132 = vmatpush.msra.mxu0 0.0
      %1133 = vmatpush.msra.mxu0 0.0
      %1134 = vmatpush.msra.mxu0 0.0
      %1135 = vmatpush.msra.mxu0 %v1116
      %1136 = vmatpush.msra.mxu0 %v1106
      %1137 = vmatmul.f32.gmra.mxu0 %v1113
      %v1138 = vpop.f32.mrf.mxu0
      %v1139 = vadd.f32 0.0, %v1138
      %1140 = vdwg.mxu0
      %1141 = vmatpush.msra.mxu0 0.0
      %1142 = vmatpush.msra.mxu0 0.0
      %1143 = vmatpush.msra.mxu0 0.0
      %1144 = vmatpush.msra.mxu0 0.0
      %1145 = vmatpush.msra.mxu0 0.0
      %1146 = vmatpush.msra.mxu0 0.0
      %1147 = vmatpush.msra.mxu0 0.0
      %1148 = vmatpush.msra.mxu0 0.0
      %1149 = vmatpush.msra.mxu0 0.0
      %1150 = vmatpush.msra.mxu0 0.0
      %1151 = vmatpush.msra.mxu0 0.0
      %1152 = vmatpush.msra.mxu0 0.0
      %1153 = vmatpush.msra.mxu0 0.0
      %1154 = vmatpush.msra.mxu0 0.0
      %1155 = vmatpush.msra.mxu0 %v1119
      %1156 = vmatpush.msra.mxu0 %v1108
      %1157 = vmatmul.f32.gmra.mxu0 %v1113
      %v1158 = vpop.f32.mrf.mxu0
      %v1159 = vadd.f32 0.0, %v1158
      %1160 = vdwg.mxu0
      %s1161 = scalar_lea.vmem %s7, 14
      %v1162 = vld [vmem:[%s1161] sm:$0x3]
      %v1164 = vperm.slane %v1162, 0
      %v1165 = vperm.slane %v1162, 1
      %v1168 = vmul.f32 %v1139, %v1164
      %v1169 = vmul.f32 %v1159, %v1165
      %v1170 = vadd.f32 %v1095, %v1168
      %v1171 = vadd.f32 %v1096, %v1169
      %v1172 = vmax.f32 %v1170, 0.0
      %v1173 = vmax.f32 %v1171, 0.0
      %v1174 = vld [vmem:[%s8] sm:$0x3]
      %v1175 = vld [vmem:[%s9] sm:$0x3]
      %1177 = vset.pattern.permute.xlu0 0
      %1178 = vperm.xlu0 %1177, %v1175
      %v1179 = vpop.permute.xlu0 %1178
      %vm1181 = vcmask 39936
      %v1183 = vsel %vm1181, %v1174, 0
      %v1186 = vsel %vm456, %v1172, 0
      %v1189 = vsel %vm456, %v1173, 0
      %1191 = vmatpush.msra.mxu0 0.0
      %1192 = vmatpush.msra.mxu0 0.0
      %1193 = vmatpush.msra.mxu0 0.0
      %1194 = vmatpush.msra.mxu0 0.0
      %1195 = vmatpush.msra.mxu0 0.0
      %1196 = vmatpush.msra.mxu0 0.0
      %1197 = vmatpush.msra.mxu0 0.0
      %1198 = vmatpush.msra.mxu0 0.0
      %1199 = vmatpush.msra.mxu0 0.0
      %1200 = vmatpush.msra.mxu0 0.0
      %1201 = vmatpush.msra.mxu0 0.0
      %1202 = vmatpush.msra.mxu0 0.0
      %1203 = vmatpush.msra.mxu0 0.0
      %1204 = vmatpush.msra.mxu0 0.0
      %1205 = vmatpush.msra.mxu0 0.0
      %1206 = vmatpush.msra.mxu0 %v1186
      %1207 = vmatmul.f32.gmra.mxu0 %v1183
      %v1208 = vpop.f32.mrf.mxu0
      %v1209 = vadd.f32 %v1179, %v1208
      %1210 = vdwg.mxu0
      %1211 = vmatpush.msra.mxu0 0.0
      %1212 = vmatpush.msra.mxu0 0.0
      %1213 = vmatpush.msra.mxu0 0.0
      %1214 = vmatpush.msra.mxu0 0.0
      %1215 = vmatpush.msra.mxu0 0.0
      %1216 = vmatpush.msra.mxu0 0.0
      %1217 = vmatpush.msra.mxu0 0.0
      %1218 = vmatpush.msra.mxu0 0.0
      %1219 = vmatpush.msra.mxu0 0.0
      %1220 = vmatpush.msra.mxu0 0.0
      %1221 = vmatpush.msra.mxu0 0.0
      %1222 = vmatpush.msra.mxu0 0.0
      %1223 = vmatpush.msra.mxu0 0.0
      %1224 = vmatpush.msra.mxu0 0.0
      %1225 = vmatpush.msra.mxu0 0.0
      %1226 = vmatpush.msra.mxu0 %v1189
      %1227 = vmatmul.f32.gmra.mxu0 %v1183
      %v1228 = vpop.f32.mrf.mxu0
      %v1229 = vadd.f32 %v1179, %v1228
      %1230 = vdwg.mxu0
      %v1231 = vmax.f32 %v1209, 0.0
      %v1232 = vmax.f32 %v1229, 0.0
      %v1235 = vrot.slane %v1232, 6
      %vm1236 = vcmask 1041408
      %v1237 = vsel %vm1236, %v1231, %v1235
      %1239 = vst [vmem:[%s359] sm:$0xf] %v1237
      %p1240 = scmp.lt.s32.totalorder %s21, 1
      %s1241 = scalar_select %p1240, %s21, 1
      %s1242 = smul.addr %s1241, 2
      %s1243 = smul.addr %s1242, 2
      %s1244 = scalar_lea.vmem %s10, %s1243
      // Predicated region
      $region61: #{_lambda_.1} parent=59 // pred_check
        %p1245 = pneg %p254
      $region62: #{_lambda_.1} parent=59 // pred_check_branch
        %1247 = sbr.rel (%p1245) target = $region64
      $region63: #{_lambda_.1} parent=59 // pred_region
        _
      $region64: #{_lambda_.1} parent=59 // pred_fallthru
        _
    $region60: #{_lambda_.1} parent=5 // pred_fallthru
      _
    %p1248 = scmp.le.s32.totalorder 2, %s16
    // Predicated region
    $region65: #{_lambda_.1} parent=5 // pred_check
      %p1249 = pneg %p1248
    $region66: #{_lambda_.1} parent=5 // pred_check_branch
      %1251 = sbr.rel (%p1249) target = $region68
    $region67: #{_lambda_.1} parent=5 // pred_region
      %s1252 = ssub.s32 %s16, 2
      // Predicated region
      $region69: #{_lambda_.1} parent=67 // pred_check
        %p1253 = pneg %p260
      $region70: #{_lambda_.1} parent=67 // pred_check_branch
        %1255 = sbr.rel (%p1253) target = $region72
      $region71: #{_lambda_.1} parent=67 // pred_region
        %p1256 = scmp.lt.s32.totalorder %s22, 1
        %s1257 = scalar_select %p1256, %s22, 1
        %s1258 = smul.addr %s1257, 2
        %s1259 = smul.addr %s1258, 2
        %s1260 = scalar_lea.vmem %s10, %s1259
      $region72: #{_lambda_.1} parent=67 // pred_fallthru
        _
    $region68: #{_lambda_.1} parent=5 // pred_fallthru
      _
  $region6: #{_lambda_.1} parent=0 // loop_footer
    %s20 = sadd.s32 1, %s16
  $region7: #{_lambda_.1} parent=0 // loop_footer_branch
    %15 = sbr.rel target = $region3
  $region8: #{_lambda_.1} parent=0 // loop_exit
    _

</llo_original>
